<compile_context>
chip_gen: v7x
topology: tpu7x:2x2x1
jax: 0.10.0
libtpu: 0.0.40
codegen_flags: <defaults>
</compile_context>

<pallas_src>
import jax
import jax.numpy as jnp
from jax.experimental import pallas as pl
from jax.experimental.pallas import tpu as pltpu


def _round_up(n, m):
    return ((n + m - 1) // m) * m


def bpmll_kernel(x_ref, w1_ref, b1_ref, w2_ref, b2_ref, w3_ref, b3_ref,
                 o_ref, h1_ref, h2_ref):
    # Layer 1: (TM, K1) bf16 @ (K1, 512) bf16 -> f32 acc -> +b -> ReLU -> bf16
    a1 = jnp.dot(x_ref[...], w1_ref[...], preferred_element_type=jnp.float32)
    h1_ref[...] = jnp.maximum(a1 + b1_ref[...], 0.0).astype(jnp.bfloat16)

    # Layer 2: (TM, 512) bf16 @ (512, 1024) bf16 -> f32 acc -> +b -> ReLU -> bf16
    a2 = jnp.dot(h1_ref[...], w2_ref[...], preferred_element_type=jnp.float32)
    h2_ref[...] = jnp.maximum(a2 + b2_ref[...], 0.0).astype(jnp.bfloat16)

    # Layer 3: (TM, 1024) bf16 @ (1024, NL_pad) bf16 -> f32 -> sigmoid
    logits = jnp.dot(h2_ref[...], w3_ref[...], preferred_element_type=jnp.float32)
    o_ref[...] = jax.nn.sigmoid(logits + b3_ref[...]).astype(o_ref.dtype)


def bpmll_forward(x, w1, b1, w2, b2, w3, b3, *, tm=256):
    """x: (B, ndims) f32.  Weights stored as (in, out); biases as (1, out)."""
    B, ndims = x.shape
    nlabels = w3.shape[1]

    # ---- TPU-friendly padding --------------------------------------------
    k1 = _round_up(ndims, 128)                    # lane-pad input features
    nl = _round_up(nlabels, 128)                  # lane-dense output columns
    tm = max(8, min(tm, _round_up(B, 8)))         # don't over-pad tiny batches
    bp = _round_up(B, tm)                         # batch padded to tile mult.

    xb = jnp.zeros((bp, k1), jnp.bfloat16).at[:B, :ndims].set(
        x.astype(jnp.bfloat16))
    w1b = jnp.zeros((k1, 512), jnp.bfloat16).at[:ndims, :].set(
        w1.astype(jnp.bfloat16))
    w2b = w2.astype(jnp.bfloat16)
    w3b = jnp.zeros((1024, nl), jnp.bfloat16).at[:, :nlabels].set(
        w3.astype(jnp.bfloat16))
    b3p = jnp.zeros((1, nl), jnp.float32).at[:, :nlabels].set(b3)

    grid = (bp // tm,)
    # Constant index_map -> weight/bias blocks stay resident in VMEM across
    # grid steps (no re-DMA per step).
    full = lambda arr: pl.BlockSpec(arr.shape, lambda i: (0, 0))

    out = pl.pallas_call(
        bpmll_kernel,
        out_shape=jax.ShapeDtypeStruct((bp, nl), jnp.float32),
        grid_spec=pltpu.PrefetchScalarGridSpec(
            num_scalar_prefetch=0,
            grid=grid,
            in_specs=[
                pl.BlockSpec((tm, k1), lambda i: (i, 0)),   # x tile
                full(w1b), full(b1),
                full(w2b), full(b2),
                full(w3b), full(b3p),
            ],
            out_specs=pl.BlockSpec((tm, nl), lambda i: (i, 0)),
            scratch_shapes=[
                pltpu.VMEM((tm, 512), jnp.bfloat16),    # h1 staging
                pltpu.VMEM((tm, 1024), jnp.bfloat16),   # h2 staging
            ],
        ),
        compiler_params=pltpu.CompilerParams(
            dimension_semantics=("parallel",)),
    )(xb, w1b, b1, w2b, b2, w3b, b3p)

    return out[:B, :nlabels]


def init_params(key, ndims, nlabels):
    """Deterministic init mimicking torch.nn.Linear (uniform +/- 1/sqrt(fan_in)).
    Weights are stored as (in_features, out_features)."""
    def linear(k, fan_in, fan_out):
        kw, kb = jax.random.split(k)
        bound = 1.0 / jnp.sqrt(fan_in)
        w = jax.random.uniform(kw, (fan_in, fan_out), jnp.float32, -bound, bound)
        b = jax.random.uniform(kb, (1, fan_out), jnp.float32, -bound, bound)
        return w, b

    k1, k2, k3 = jax.random.split(key, 3)
    w1, b1 = linear(k1, ndims, 512)
    w2, b2 = linear(k2, 512, 1024)
    w3, b3 = linear(k3, 1024, nlabels)
    return w1, b1, w2, b2, w3, b3


if __name__ == "__main__":
    key = jax.random.PRNGKey(0)
    ndims = 300      # default in the PyTorch module
    nlabels = 16
    batch = 16

    k_x, k_p = jax.random.split(key)
    x = jax.random.normal(k_x, (batch, ndims), jnp.float32)
    params = init_params(k_p, ndims, nlabels)

    out = bpmll_forward(x, *params)
    out = jax.block_until_ready(out)

    # Reference: same bf16 operand rounding as the kernel, f32 math.
    w1, b1, w2, b2, w3, b3 = params
    f = lambda a: a.astype(jnp.bfloat16).astype(jnp.float32)
    h1 = jnp.maximum(f(x) @ f(w1) + b1, 0.0)
    h2 = jnp.maximum(f(h1) @ f(w2) + b2, 0.0)
    ref = jax.nn.sigmoid(f(h2) @ f(w3) + b3)

    assert out.shape == (batch, nlabels)
    err = float(jnp.max(jnp.abs(out - ref)))
    assert jnp.allclose(out, ref, atol=2e-2, rtol=2e-2), err

    print("KERNEL_OK")
</pallas_src>

<mosaic_0001>
module attributes {stable_mosaic.version = 11 : i64} {
  func.func @bpmll_kernel(%arg0: i32, %arg1: memref<16x384xbf16, #tpu.memory_space<vmem>>, %arg2: memref<384x512xbf16, #tpu.memory_space<vmem>>, %arg3: memref<1x512xf32, #tpu.memory_space<vmem>>, %arg4: memref<512x1024xbf16, #tpu.memory_space<vmem>>, %arg5: memref<1x1024xf32, #tpu.memory_space<vmem>>, %arg6: memref<1024x128xbf16, #tpu.memory_space<vmem>>, %arg7: memref<1x128xf32, #tpu.memory_space<vmem>>, %arg8: memref<16x128xf32, #tpu.memory_space<vmem>>, %arg9: memref<16x512xbf16, #tpu.memory_space<vmem>>, %arg10: memref<16x1024xbf16, #tpu.memory_space<vmem>>) attributes {dimension_semantics = [#tpu.dimension_semantics<parallel>], iteration_bounds = array<i64: 1>, scalar_prefetch = 0 : i64, scratch_operands = 2 : i64, tpu.core_type = #tpu.core_type<tc>, window_params = [{transform_indices = @transform_0, window_bounds = array<i64: 16, 384>}, {pipeline_mode = #tpu.pipeline_mode<synchronous>, transform_indices = @transform_1, window_bounds = array<i64: 384, 512>}, {pipeline_mode = #tpu.pipeline_mode<synchronous>, transform_indices = @transform_2, window_bounds = array<i64: 1, 512>}, {pipeline_mode = #tpu.pipeline_mode<synchronous>, transform_indices = @transform_3, window_bounds = array<i64: 512, 1024>}, {pipeline_mode = #tpu.pipeline_mode<synchronous>, transform_indices = @transform_4, window_bounds = array<i64: 1, 1024>}, {pipeline_mode = #tpu.pipeline_mode<synchronous>, transform_indices = @transform_5, window_bounds = array<i64: 1024, 128>}, {pipeline_mode = #tpu.pipeline_mode<synchronous>, transform_indices = @transform_6, window_bounds = array<i64: 1, 128>}, {transform_indices = @transform_7, window_bounds = array<i64: 16, 128>}]} {
    %c0 = arith.constant 0 : index
    %c0_0 = arith.constant 0 : index
    %0 = vector.load %arg1[%c0, %c0_0] : memref<16x384xbf16, #tpu.memory_space<vmem>>, vector<16x384xbf16>
    %c0_1 = arith.constant 0 : index
    %c0_2 = arith.constant 0 : index
    %1 = vector.load %arg2[%c0_1, %c0_2] : memref<384x512xbf16, #tpu.memory_space<vmem>>, vector<384x512xbf16>
    %cst = arith.constant dense<0.000000e+00> : vector<16x512xf32>
    %2 = tpu.matmul %0, %1, %cst {dimension_numbers = #tpu.dot_dimension_numbers<[1], [0], [0], [1], [0, 0, 1, 1], [], []>} : vector<16x384xbf16>, vector<384x512xbf16>, vector<16x512xf32> -> vector<16x512xf32>
    %c0_3 = arith.constant 0 : index
    %c0_4 = arith.constant 0 : index
    %3 = vector.load %arg3[%c0_3, %c0_4] : memref<1x512xf32, #tpu.memory_space<vmem>>, vector<1x512xf32>
    %4 = vector.broadcast %3 : vector<1x512xf32> to vector<16x512xf32>
    %5 = arith.addf %2, %4 : vector<16x512xf32>
    %cst_5 = arith.constant 0.000000e+00 : f32
    %6 = vector.broadcast %cst_5 : f32 to vector<16x512xf32>
    %7 = arith.maximumf %5, %6 : vector<16x512xf32>
    %8 = arith.truncf %7 : vector<16x512xf32> to vector<16x512xbf16>
    %c0_6 = arith.constant 0 : index
    %c0_7 = arith.constant 0 : index
    %9 = vector.load %arg9[%c0_6, %c0_7] : memref<16x512xbf16, #tpu.memory_space<vmem>>, vector<16x512xbf16>
    tpu.vector_store %arg9[%c0_6, %c0_7], %8 {strides = array<i32>} : memref<16x512xbf16, #tpu.memory_space<vmem>>, vector<16x512xbf16>,
    %c0_8 = arith.constant 0 : index
    %c0_9 = arith.constant 0 : index
    %10 = vector.load %arg9[%c0_8, %c0_9] : memref<16x512xbf16, #tpu.memory_space<vmem>>, vector<16x512xbf16>
    %c0_10 = arith.constant 0 : index
    %c0_11 = arith.constant 0 : index
    %11 = vector.load %arg4[%c0_10, %c0_11] : memref<512x1024xbf16, #tpu.memory_space<vmem>>, vector<512x1024xbf16>
    %cst_12 = arith.constant dense<0.000000e+00> : vector<16x1024xf32>
    %12 = tpu.matmul %10, %11, %cst_12 {dimension_numbers = #tpu.dot_dimension_numbers<[1], [0], [0], [1], [0, 0, 1, 1], [], []>} : vector<16x512xbf16>, vector<512x1024xbf16>, vector<16x1024xf32> -> vector<16x1024xf32>
    %c0_13 = arith.constant 0 : index
    %c0_14 = arith.constant 0 : index
    %13 = vector.load %arg5[%c0_13, %c0_14] : memref<1x1024xf32, #tpu.memory_space<vmem>>, vector<1x1024xf32>
    %14 = vector.broadcast %13 : vector<1x1024xf32> to vector<16x1024xf32>
    %15 = arith.addf %12, %14 : vector<16x1024xf32>
    %cst_15 = arith.constant 0.000000e+00 : f32
    %16 = vector.broadcast %cst_15 : f32 to vector<16x1024xf32>
    %17 = arith.maximumf %15, %16 : vector<16x1024xf32>
    %18 = arith.truncf %17 : vector<16x1024xf32> to vector<16x1024xbf16>
    %c0_16 = arith.constant 0 : index
    %c0_17 = arith.constant 0 : index
    %19 = vector.load %arg10[%c0_16, %c0_17] : memref<16x1024xbf16, #tpu.memory_space<vmem>>, vector<16x1024xbf16>
    tpu.vector_store %arg10[%c0_16, %c0_17], %18 {strides = array<i32>} : memref<16x1024xbf16, #tpu.memory_space<vmem>>, vector<16x1024xbf16>,
    %c0_18 = arith.constant 0 : index
    %c0_19 = arith.constant 0 : index
    %20 = vector.load %arg10[%c0_18, %c0_19] : memref<16x1024xbf16, #tpu.memory_space<vmem>>, vector<16x1024xbf16>
    %c0_20 = arith.constant 0 : index
    %c0_21 = arith.constant 0 : index
    %21 = vector.load %arg6[%c0_20, %c0_21] : memref<1024x128xbf16, #tpu.memory_space<vmem>>, vector<1024x128xbf16>
    %cst_22 = arith.constant dense<0.000000e+00> : vector<16x128xf32>
    %22 = tpu.matmul %20, %21, %cst_22 {dimension_numbers = #tpu.dot_dimension_numbers<[1], [0], [0], [1], [0, 0, 1, 1], [], []>} : vector<16x1024xbf16>, vector<1024x128xbf16>, vector<16x128xf32> -> vector<16x128xf32>
    %c0_23 = arith.constant 0 : index
    %c0_24 = arith.constant 0 : index
    %23 = vector.load %arg7[%c0_23, %c0_24] : memref<1x128xf32, #tpu.memory_space<vmem>>, vector<1x128xf32>
    %24 = vector.broadcast %23 : vector<1x128xf32> to vector<16x128xf32>
    %25 = arith.addf %22, %24 : vector<16x128xf32>
    %26 = arith.negf %25 : vector<16x128xf32>
    %27 = math.exp %26 : vector<16x128xf32>
    %cst_25 = arith.constant 1.000000e+00 : f32
    %28 = vector.broadcast %cst_25 : f32 to vector<16x128xf32>
    %29 = arith.addf %28, %27 : vector<16x128xf32>
    %30 = arith.divf %28, %29 : vector<16x128xf32>
    %c0_26 = arith.constant 0 : index
    %c0_27 = arith.constant 0 : index
    %31 = vector.load %arg8[%c0_26, %c0_27] : memref<16x128xf32, #tpu.memory_space<vmem>>, vector<16x128xf32>
    tpu.vector_store %arg8[%c0_26, %c0_27], %30 {strides = array<i32>} : memref<16x128xf32, #tpu.memory_space<vmem>>, vector<16x128xf32>,
    return
  }
  func.func @transform_0(%arg0: i32) -> (i32, i32) {
    %c0_i32 = arith.constant 0 : i32
    %c0_i32_0 = arith.constant 0 : i32
    return %arg0, %c0_i32 : i32, i32
  }
  func.func @transform_1(%arg0: i32) -> (i32, i32) {
    %c0_i32 = arith.constant 0 : i32
    %c0_i32_0 = arith.constant 0 : i32
    %c0_i32_1 = arith.constant 0 : i32
    return %c0_i32, %c0_i32_0 : i32, i32
  }
  func.func @transform_2(%arg0: i32) -> (i32, i32) {
    %c0_i32 = arith.constant 0 : i32
    %c0_i32_0 = arith.constant 0 : i32
    %c0_i32_1 = arith.constant 0 : i32
    return %c0_i32, %c0_i32_0 : i32, i32
  }
  func.func @transform_3(%arg0: i32) -> (i32, i32) {
    %c0_i32 = arith.constant 0 : i32
    %c0_i32_0 = arith.constant 0 : i32
    %c0_i32_1 = arith.constant 0 : i32
    return %c0_i32, %c0_i32_0 : i32, i32
  }
  func.func @transform_4(%arg0: i32) -> (i32, i32) {
    %c0_i32 = arith.constant 0 : i32
    %c0_i32_0 = arith.constant 0 : i32
    %c0_i32_1 = arith.constant 0 : i32
    return %c0_i32, %c0_i32_0 : i32, i32
  }
  func.func @transform_5(%arg0: i32) -> (i32, i32) {
    %c0_i32 = arith.constant 0 : i32
    %c0_i32_0 = arith.constant 0 : i32
    %c0_i32_1 = arith.constant 0 : i32
    return %c0_i32, %c0_i32_0 : i32, i32
  }
  func.func @transform_6(%arg0: i32) -> (i32, i32) {
    %c0_i32 = arith.constant 0 : i32
    %c0_i32_0 = arith.constant 0 : i32
    %c0_i32_1 = arith.constant 0 : i32
    return %c0_i32, %c0_i32_0 : i32, i32
  }
  func.func @transform_7(%arg0: i32) -> (i32, i32) {
    %c0_i32 = arith.constant 0 : i32
    %c0_i32_0 = arith.constant 0 : i32
    return %arg0, %c0_i32 : i32, i32
  }
}

</mosaic_0001>

<llo_original>
// kernel: tpu_custom_call.1
$region0: #{tpu_custom_call.1}
  #allocation0 [shape = 'u32[]', space=smem, size = 0x4, offset = 0x4, fixed_abs, tag = 'smem constant byte address 0x4 - core index']
  #allocation1 [shape = 'u32[144,128]{1,0:T(1,128)}', space=vmem, size = 0x12000, scoped, tag = 'internal scratch']
  #allocation2 [shape = 'bf16[16,512]{1,0:T(16,128)(2,1)}', space=vmem, size = 0x4000, scoped, tag = 'scratch operand']
  #allocation3 [shape = 'bf16[16,1024]{1,0:T(16,128)(2,1)}', space=vmem, size = 0x8000, scoped, tag = 'scratch operand']
  %s0 = inlined_call_operand.hbm [shape: bf16[16,384], index: 0, kind: input, shape index: {}]
  %s1 = inlined_call_operand.hbm [shape: bf16[384,512], index: 1, kind: input, shape index: {}]
  %s2 = inlined_call_operand.vmem [shape: f32[1,512], index: 2, kind: input, shape index: {}]
  %s3 = inlined_call_operand.hbm [shape: bf16[512,1024], index: 3, kind: input, shape index: {}]
  %s4 = inlined_call_operand.vmem [shape: f32[1,1024], index: 4, kind: input, shape index: {}]
  %s5 = inlined_call_operand.hbm [shape: bf16[1024,128], index: 5, kind: input, shape index: {}]
  %s6 = inlined_call_operand.vmem [shape: f32[1,128], index: 6, kind: input, shape index: {}]
  %s7 = inlined_call_operand.hbm [shape: f32[16,128], index: 7, kind: output, shape index: {}]
  %s8 = sld [smem:[#allocation0]]
  $region54: #{tpu_custom_call.1} parent=0
    _
  %s10 = ssub.s32 1, %s8
  %s11 = scalar_select 0, %s10, %s8
  $region1: #{tpu_custom_call.1} parent=0
    #allocation4 [shape = 'u8[12288]{0}', space=vmem, size = 0x3000, scoped, tag = 'input window, operand 0, single buffered']
    #allocation5 [shape = 's32[1]{0}', space=sflag, size = 0x4, scoped, tag = 'scoped memory for tpu_custom_call.1']
    #allocation6 [shape = 's32[1]{0}', space=sflag, size = 0x4, scoped, tag = 'scoped memory for tpu_custom_call.1']
    #allocation7 [shape = 'u8[393216]{0}', space=vmem, size = 0x60000, scoped, tag = 'input window, operand 1, single buffered']
    #allocation8 [shape = 's32[1]{0}', space=sflag, size = 0x4, scoped, tag = 'scoped memory for tpu_custom_call.1']
    #allocation9 [shape = 'u8[1048576]{0}', space=vmem, size = 0x100000, scoped, tag = 'input window, operand 3, single buffered']
    #allocation10 [shape = 'u8[262144]{0}', space=vmem, size = 0x40000, scoped, tag = 'input window, operand 5, single buffered']
    #allocation11 [shape = 's32[1]{0}', space=sflag, size = 0x4, scoped, tag = 'scoped memory for tpu_custom_call.1']
    #allocation12 [shape = 'u8[8192]{0}', space=vmem, size = 0x2000, scoped, tag = 'output window, operand 0, single buffered']
    %12 = vsyncpa [#allocation5], 0
    %13 = vsyncpa [#allocation8], 0
    %14 = vsyncpa [#allocation11], 0
    %15 = vsyncpa [#allocation6], 0
    // Predicated region
    $region2: #{tpu_custom_call.1} parent=1 // pred_check
      _
    $region3: #{tpu_custom_call.1} parent=1 // pred_check_branch
      %17 = sbr.rel (0) target = $region5
    $region4: #{tpu_custom_call.1} parent=1 // pred_region
      %s19 = ssub.s32 384, 384
      %20 = vsyncadd [#allocation5], %s19
      %s21 = sshll.u32 [#allocation4], 4
      %s22 = int_to_ptr.vmem [resolvable:$true] %s21
      %27 = dma.hbm_to_vmem [thread:$0]  %s0, 384, %s22, [#allocation5], 192, 192, 12
    $region5: #{tpu_custom_call.1} parent=1 // pred_fallthru
      _
    // Predicated region
    $region6: #{tpu_custom_call.1} parent=1 // pred_check
      _
    $region7: #{tpu_custom_call.1} parent=1 // pred_check_branch
      %29 = sbr.rel (0) target = $region9
    $region8: #{tpu_custom_call.1} parent=1 // pred_region
      %s31 = ssub.s32 12288, 12288
      %32 = vsyncadd [#allocation8], %s31
      %s33 = sshll.u32 [#allocation7], 4
      %s34 = int_to_ptr.vmem [resolvable:$true] %s33
      %39 = dma.hbm_to_vmem [thread:$0]  %s1, 12288, %s34, [#allocation8], 256, 256, 16
    $region9: #{tpu_custom_call.1} parent=1 // pred_fallthru
      _
    // Predicated region
    $region10: #{tpu_custom_call.1} parent=1 // pred_check
      _
    $region11: #{tpu_custom_call.1} parent=1 // pred_check_branch
      %41 = sbr.rel (0) target = $region13
    $region12: #{tpu_custom_call.1} parent=1 // pred_region
      _
    $region13: #{tpu_custom_call.1} parent=1 // pred_fallthru
      _
    // Predicated region
    $region14: #{tpu_custom_call.1} parent=1 // pred_check
      _
    $region15: #{tpu_custom_call.1} parent=1 // pred_check_branch
      %43 = sbr.rel (0) target = $region17
    $region16: #{tpu_custom_call.1} parent=1 // pred_region
      %s45 = ssub.s32 32768, 32768
      %46 = vsyncadd [#allocation8], %s45
      %s47 = sshll.u32 [#allocation9], 4
      %s48 = int_to_ptr.vmem [resolvable:$true] %s47
      %53 = dma.hbm_to_vmem [thread:$0]  %s3, 32768, %s48, [#allocation8], 512, 512, 32
    $region17: #{tpu_custom_call.1} parent=1 // pred_fallthru
      _
    // Predicated region
    $region18: #{tpu_custom_call.1} parent=1 // pred_check
      _
    $region19: #{tpu_custom_call.1} parent=1 // pred_check_branch
      %55 = sbr.rel (0) target = $region21
    $region20: #{tpu_custom_call.1} parent=1 // pred_region
      _
    $region21: #{tpu_custom_call.1} parent=1 // pred_fallthru
      _
    // Predicated region
    $region22: #{tpu_custom_call.1} parent=1 // pred_check
      _
    $region23: #{tpu_custom_call.1} parent=1 // pred_check_branch
      %57 = sbr.rel (0) target = $region25
    $region24: #{tpu_custom_call.1} parent=1 // pred_region
      %s59 = ssub.s32 8192, 8192
      %60 = vsyncadd [#allocation11], %s59
      %s61 = sshll.u32 [#allocation10], 4
      %s62 = int_to_ptr.vmem [resolvable:$true] %s61
      %67 = dma.hbm_to_vmem [thread:$0]  %s5, 8192, %s62, [#allocation11], 64, 64, 4
    $region25: #{tpu_custom_call.1} parent=1 // pred_fallthru
      _
    // Predicated region
    $region26: #{tpu_custom_call.1} parent=1 // pred_check
      _
    $region27: #{tpu_custom_call.1} parent=1 // pred_check_branch
      %69 = sbr.rel (0) target = $region29
    $region28: #{tpu_custom_call.1} parent=1 // pred_region
      _
    $region29: #{tpu_custom_call.1} parent=1 // pred_fallthru
      _
    // Predicated region
    $region30: #{tpu_custom_call.1} parent=1 // pred_check
      _
    $region31: #{tpu_custom_call.1} parent=1 // pred_check_branch
      %71 = sbr.rel (0) target = $region33
    $region32: #{tpu_custom_call.1} parent=1 // pred_region
      %72 = dma.done [#allocation5], 384
    $region33: #{tpu_custom_call.1} parent=1 // pred_fallthru
      _
    // Predicated region
    $region34: #{tpu_custom_call.1} parent=1 // pred_check
      _
    $region35: #{tpu_custom_call.1} parent=1 // pred_check_branch
      %74 = sbr.rel (0) target = $region37
    $region36: #{tpu_custom_call.1} parent=1 // pred_region
      %75 = dma.done [#allocation8], 12288
    $region37: #{tpu_custom_call.1} parent=1 // pred_fallthru
      _
    // Predicated region
    $region38: #{tpu_custom_call.1} parent=1 // pred_check
      _
    $region39: #{tpu_custom_call.1} parent=1 // pred_check_branch
      %77 = sbr.rel (0) target = $region41
    $region40: #{tpu_custom_call.1} parent=1 // pred_region
      %78 = dma.done [#allocation8], 32768
    $region41: #{tpu_custom_call.1} parent=1 // pred_fallthru
      _
    // Predicated region
    $region42: #{tpu_custom_call.1} parent=1 // pred_check
      _
    $region43: #{tpu_custom_call.1} parent=1 // pred_check_branch
      %80 = sbr.rel (0) target = $region45
    $region44: #{tpu_custom_call.1} parent=1 // pred_region
      %81 = dma.done [#allocation11], 8192
    $region45: #{tpu_custom_call.1} parent=1 // pred_fallthru
      _
    %v83 = vld [vmem:[#allocation4] sm:$0xff]
    %v84 = vld [vmem:[#allocation4 + $0x8] sm:$0xf]
    %v85 = vld [vmem:[#allocation4 + $0xc] sm:$0xff]
    %v86 = vld [vmem:[#allocation4 + $0x14] sm:$0xf]
    %v87 = vld [vmem:[#allocation7] sm:$0xff]
    %v88 = vld [vmem:[#allocation7 + $0x8] sm:$0xff]
    %v89 = vld [vmem:[#allocation7 + $0x10] sm:$0xff]
    %v90 = vld [vmem:[#allocation7 + $0x18] sm:$0xff]
    %v91 = vld [vmem:[#allocation7 + $0x20] sm:$0xff]
    %v92 = vld [vmem:[#allocation7 + $0x28] sm:$0xff]
    %v93 = vld [vmem:[#allocation7 + $0x30] sm:$0xff]
    %v94 = vld [vmem:[#allocation7 + $0x38] sm:$0xff]
    %v95 = vld [vmem:[#allocation7 + $0x40] sm:$0xff]
    %v96 = vld [vmem:[#allocation7 + $0x48] sm:$0xff]
    %v97 = vld [vmem:[#allocation7 + $0x50] sm:$0xff]
    %v98 = vld [vmem:[#allocation7 + $0x58] sm:$0xff]
    %v99 = vld [vmem:[#allocation7 + $0x60] sm:$0xff]
    %v100 = vld [vmem:[#allocation7 + $0x68] sm:$0xff]
    %v101 = vld [vmem:[#allocation7 + $0x70] sm:$0xff]
    %v102 = vld [vmem:[#allocation7 + $0x78] sm:$0xff]
    %v103 = vld [vmem:[#allocation7 + $0x80] sm:$0xff]
    %v104 = vld [vmem:[#allocation7 + $0x88] sm:$0xff]
    %v105 = vld [vmem:[#allocation7 + $0x90] sm:$0xff]
    %v106 = vld [vmem:[#allocation7 + $0x98] sm:$0xff]
    %v107 = vld [vmem:[#allocation7 + $0xa0] sm:$0xff]
    %v108 = vld [vmem:[#allocation7 + $0xa8] sm:$0xff]
    %v109 = vld [vmem:[#allocation7 + $0xb0] sm:$0xff]
    %v110 = vld [vmem:[#allocation7 + $0xb8] sm:$0xff]
    %v111 = vld [vmem:[#allocation7 + $0xc0] sm:$0xff]
    %v112 = vld [vmem:[#allocation7 + $0xc8] sm:$0xff]
    %v113 = vld [vmem:[#allocation7 + $0xd0] sm:$0xff]
    %v114 = vld [vmem:[#allocation7 + $0xd8] sm:$0xff]
    %v115 = vld [vmem:[#allocation7 + $0xe0] sm:$0xff]
    %v116 = vld [vmem:[#allocation7 + $0xe8] sm:$0xff]
    %v117 = vld [vmem:[#allocation7 + $0xf0] sm:$0xff]
    %v118 = vld [vmem:[#allocation7 + $0xf8] sm:$0xff]
    %v119 = vld [vmem:[#allocation7 + $0x100] sm:$0xff]
    %v120 = vld [vmem:[#allocation7 + $0x108] sm:$0xff]
    %v121 = vld [vmem:[#allocation7 + $0x110] sm:$0xff]
    %v122 = vld [vmem:[#allocation7 + $0x118] sm:$0xff]
    %v123 = vld [vmem:[#allocation7 + $0x120] sm:$0xff]
    %v124 = vld [vmem:[#allocation7 + $0x128] sm:$0xff]
    %v125 = vld [vmem:[#allocation7 + $0x130] sm:$0xff]
    %v126 = vld [vmem:[#allocation7 + $0x138] sm:$0xff]
    %v127 = vld [vmem:[#allocation7 + $0x140] sm:$0xff]
    %v128 = vld [vmem:[#allocation7 + $0x148] sm:$0xff]
    %v129 = vld [vmem:[#allocation7 + $0x150] sm:$0xff]
    %v130 = vld [vmem:[#allocation7 + $0x158] sm:$0xff]
    %v131 = vld [vmem:[#allocation7 + $0x160] sm:$0xff]
    %v132 = vld [vmem:[#allocation7 + $0x168] sm:$0xff]
    %v133 = vld [vmem:[#allocation7 + $0x170] sm:$0xff]
    %v134 = vld [vmem:[#allocation7 + $0x178] sm:$0xff]
    %v135 = vld [vmem:[#allocation7 + $0x180] sm:$0xff]
    %v136 = vld [vmem:[#allocation7 + $0x188] sm:$0xff]
    %v137 = vld [vmem:[#allocation7 + $0x190] sm:$0xff]
    %v138 = vld [vmem:[#allocation7 + $0x198] sm:$0xff]
    %v139 = vld [vmem:[#allocation7 + $0x1a0] sm:$0xff]
    %v140 = vld [vmem:[#allocation7 + $0x1a8] sm:$0xff]
    %v141 = vld [vmem:[#allocation7 + $0x1b0] sm:$0xff]
    %v142 = vld [vmem:[#allocation7 + $0x1b8] sm:$0xff]
    %v143 = vld [vmem:[#allocation7 + $0x1c0] sm:$0xff]
    %v144 = vld [vmem:[#allocation7 + $0x1c8] sm:$0xff]
    %v145 = vld [vmem:[#allocation7 + $0x1d0] sm:$0xff]
    %v146 = vld [vmem:[#allocation7 + $0x1d8] sm:$0xff]
    %v147 = vld [vmem:[#allocation7 + $0x1e0] sm:$0xff]
    %v148 = vld [vmem:[#allocation7 + $0x1e8] sm:$0xff]
    %v149 = vld [vmem:[#allocation7 + $0x1f0] sm:$0xff]
    %v150 = vld [vmem:[#allocation7 + $0x1f8] sm:$0xff]
    %v151 = vld [vmem:[#allocation7 + $0x200] sm:$0xff]
    %v152 = vld [vmem:[#allocation7 + $0x208] sm:$0xff]
    %v153 = vld [vmem:[#allocation7 + $0x210] sm:$0xff]
    %v154 = vld [vmem:[#allocation7 + $0x218] sm:$0xff]
    %v155 = vld [vmem:[#allocation7 + $0x220] sm:$0xff]
    %v156 = vld [vmem:[#allocation7 + $0x228] sm:$0xff]
    %v157 = vld [vmem:[#allocation7 + $0x230] sm:$0xff]
    %v158 = vld [vmem:[#allocation7 + $0x238] sm:$0xff]
    %v159 = vld [vmem:[#allocation7 + $0x240] sm:$0xff]
    %v160 = vld [vmem:[#allocation7 + $0x248] sm:$0xff]
    %v161 = vld [vmem:[#allocation7 + $0x250] sm:$0xff]
    %v162 = vld [vmem:[#allocation7 + $0x258] sm:$0xff]
    %v163 = vld [vmem:[#allocation7 + $0x260] sm:$0xff]
    %v164 = vld [vmem:[#allocation7 + $0x268] sm:$0xff]
    %v165 = vld [vmem:[#allocation7 + $0x270] sm:$0xff]
    %v166 = vld [vmem:[#allocation7 + $0x278] sm:$0xff]
    %v167 = vld [vmem:[#allocation7 + $0x280] sm:$0xff]
    %v168 = vld [vmem:[#allocation7 + $0x288] sm:$0xff]
    %v169 = vld [vmem:[#allocation7 + $0x290] sm:$0xff]
    %v170 = vld [vmem:[#allocation7 + $0x298] sm:$0xff]
    %v171 = vld [vmem:[#allocation7 + $0x2a0] sm:$0xff]
    %v172 = vld [vmem:[#allocation7 + $0x2a8] sm:$0xff]
    %v173 = vld [vmem:[#allocation7 + $0x2b0] sm:$0xff]
    %v174 = vld [vmem:[#allocation7 + $0x2b8] sm:$0xff]
    %v175 = vld [vmem:[#allocation7 + $0x2c0] sm:$0xff]
    %v176 = vld [vmem:[#allocation7 + $0x2c8] sm:$0xff]
    %v177 = vld [vmem:[#allocation7 + $0x2d0] sm:$0xff]
    %v178 = vld [vmem:[#allocation7 + $0x2d8] sm:$0xff]
    %v179 = vld [vmem:[#allocation7 + $0x2e0] sm:$0xff]
    %v180 = vld [vmem:[#allocation7 + $0x2e8] sm:$0xff]
    %v181 = vld [vmem:[#allocation7 + $0x2f0] sm:$0xff]
    %v182 = vld [vmem:[#allocation7 + $0x2f8] sm:$0xff]
    %v183 = vld [vmem:[%s2] sm:$0xf]
    %v185 = vlaneseq
    %v186 = vshrl.u32 %v185, 7
    %v187 = vsub.s32 0, %v186
    %v188 = vrot.slane %v183, %v187
    %v189 = vlaneseq
    %v190 = vshrl.u32 %v189, 7
    %v191 = vsub.s32 1, %v190
    %v192 = vrot.slane %v183, %v191
    %v193 = vlaneseq
    %v194 = vshrl.u32 %v193, 7
    %v195 = vsub.s32 2, %v194
    %v196 = vrot.slane %v183, %v195
    %v197 = vlaneseq
    %v198 = vshrl.u32 %v197, 7
    %v199 = vsub.s32 3, %v198
    %v200 = vrot.slane %v183, %v199
    %v209 = vunpack.c.l.b16 %v83
    %v210 = vunpack.c.h.b16 %v83
    %v211 = vunpack.c.l.b16 %v84
    %v212 = vunpack.c.l.b16 %v85
    %v213 = vunpack.c.h.b16 %v85
    %v214 = vunpack.c.l.b16 %v86
    %v215 = vpack.c.b16 %v212, %v209
    %v216 = vpack.c.b16 %v213, %v210
    %v217 = vpack.c.b16 %v214, %v211
    %v317 = vunpack.c.l.b16 %v87
    %v318 = vunpack.c.h.b16 %v87
    %v319 = vunpack.c.l.b16 %v88
    %v320 = vunpack.c.h.b16 %v88
    %v321 = vunpack.c.l.b16 %v89
    %v322 = vunpack.c.h.b16 %v89
    %v323 = vunpack.c.l.b16 %v90
    %v324 = vunpack.c.h.b16 %v90
    %v325 = vunpack.c.l.b16 %v91
    %v326 = vunpack.c.h.b16 %v91
    %v327 = vunpack.c.l.b16 %v92
    %v328 = vunpack.c.h.b16 %v92
    %v329 = vunpack.c.l.b16 %v93
    %v330 = vunpack.c.h.b16 %v93
    %v331 = vunpack.c.l.b16 %v94
    %v332 = vunpack.c.h.b16 %v94
    %v333 = vunpack.c.l.b16 %v95
    %v334 = vunpack.c.h.b16 %v95
    %v335 = vunpack.c.l.b16 %v96
    %v336 = vunpack.c.h.b16 %v96
    %v337 = vunpack.c.l.b16 %v97
    %v338 = vunpack.c.h.b16 %v97
    %v339 = vunpack.c.l.b16 %v98
    %v340 = vunpack.c.h.b16 %v98
    %v341 = vunpack.c.l.b16 %v99
    %v342 = vunpack.c.h.b16 %v99
    %v343 = vunpack.c.l.b16 %v100
    %v344 = vunpack.c.h.b16 %v100
    %v345 = vunpack.c.l.b16 %v101
    %v346 = vunpack.c.h.b16 %v101
    %v347 = vunpack.c.l.b16 %v102
    %v348 = vunpack.c.h.b16 %v102
    %v349 = vunpack.c.l.b16 %v103
    %v350 = vunpack.c.h.b16 %v103
    %v351 = vunpack.c.l.b16 %v104
    %v352 = vunpack.c.h.b16 %v104
    %v353 = vunpack.c.l.b16 %v105
    %v354 = vunpack.c.h.b16 %v105
    %v355 = vunpack.c.l.b16 %v106
    %v356 = vunpack.c.h.b16 %v106
    %v357 = vunpack.c.l.b16 %v107
    %v358 = vunpack.c.h.b16 %v107
    %v359 = vunpack.c.l.b16 %v108
    %v360 = vunpack.c.h.b16 %v108
    %v361 = vunpack.c.l.b16 %v109
    %v362 = vunpack.c.h.b16 %v109
    %v363 = vunpack.c.l.b16 %v110
    %v364 = vunpack.c.h.b16 %v110
    %v365 = vunpack.c.l.b16 %v111
    %v366 = vunpack.c.h.b16 %v111
    %v367 = vunpack.c.l.b16 %v112
    %v368 = vunpack.c.h.b16 %v112
    %v369 = vunpack.c.l.b16 %v113
    %v370 = vunpack.c.h.b16 %v113
    %v371 = vunpack.c.l.b16 %v114
    %v372 = vunpack.c.h.b16 %v114
    %v373 = vunpack.c.l.b16 %v115
    %v374 = vunpack.c.h.b16 %v115
    %v375 = vunpack.c.l.b16 %v116
    %v376 = vunpack.c.h.b16 %v116
    %v377 = vunpack.c.l.b16 %v117
    %v378 = vunpack.c.h.b16 %v117
    %v379 = vunpack.c.l.b16 %v118
    %v380 = vunpack.c.h.b16 %v118
    %v381 = vunpack.c.l.b16 %v119
    %v382 = vunpack.c.h.b16 %v119
    %v383 = vunpack.c.l.b16 %v120
    %v384 = vunpack.c.h.b16 %v120
    %v385 = vunpack.c.l.b16 %v121
    %v386 = vunpack.c.h.b16 %v121
    %v387 = vunpack.c.l.b16 %v122
    %v388 = vunpack.c.h.b16 %v122
    %v389 = vunpack.c.l.b16 %v123
    %v390 = vunpack.c.h.b16 %v123
    %v391 = vunpack.c.l.b16 %v124
    %v392 = vunpack.c.h.b16 %v124
    %v393 = vunpack.c.l.b16 %v125
    %v394 = vunpack.c.h.b16 %v125
    %v395 = vunpack.c.l.b16 %v126
    %v396 = vunpack.c.h.b16 %v126
    %v397 = vunpack.c.l.b16 %v127
    %v398 = vunpack.c.h.b16 %v127
    %v399 = vunpack.c.l.b16 %v128
    %v400 = vunpack.c.h.b16 %v128
    %v401 = vunpack.c.l.b16 %v129
    %v402 = vunpack.c.h.b16 %v129
    %v403 = vunpack.c.l.b16 %v130
    %v404 = vunpack.c.h.b16 %v130
    %v405 = vunpack.c.l.b16 %v131
    %v406 = vunpack.c.h.b16 %v131
    %v407 = vunpack.c.l.b16 %v132
    %v408 = vunpack.c.h.b16 %v132
    %v409 = vunpack.c.l.b16 %v133
    %v410 = vunpack.c.h.b16 %v133
    %v411 = vunpack.c.l.b16 %v134
    %v412 = vunpack.c.h.b16 %v134
    %v413 = vunpack.c.l.b16 %v135
    %v414 = vunpack.c.h.b16 %v135
    %v415 = vunpack.c.l.b16 %v136
    %v416 = vunpack.c.h.b16 %v136
    %v417 = vunpack.c.l.b16 %v137
    %v418 = vunpack.c.h.b16 %v137
    %v419 = vunpack.c.l.b16 %v138
    %v420 = vunpack.c.h.b16 %v138
    %v421 = vunpack.c.l.b16 %v139
    %v422 = vunpack.c.h.b16 %v139
    %v423 = vunpack.c.l.b16 %v140
    %v424 = vunpack.c.h.b16 %v140
    %v425 = vunpack.c.l.b16 %v141
    %v426 = vunpack.c.h.b16 %v141
    %v427 = vunpack.c.l.b16 %v142
    %v428 = vunpack.c.h.b16 %v142
    %v429 = vunpack.c.l.b16 %v143
    %v430 = vunpack.c.h.b16 %v143
    %v431 = vunpack.c.l.b16 %v144
    %v432 = vunpack.c.h.b16 %v144
    %v433 = vunpack.c.l.b16 %v145
    %v434 = vunpack.c.h.b16 %v145
    %v435 = vunpack.c.l.b16 %v146
    %v436 = vunpack.c.h.b16 %v146
    %v437 = vunpack.c.l.b16 %v147
    %v438 = vunpack.c.h.b16 %v147
    %v439 = vunpack.c.l.b16 %v148
    %v440 = vunpack.c.h.b16 %v148
    %v441 = vunpack.c.l.b16 %v149
    %v442 = vunpack.c.h.b16 %v149
    %v443 = vunpack.c.l.b16 %v150
    %v444 = vunpack.c.h.b16 %v150
    %v445 = vunpack.c.l.b16 %v151
    %v446 = vunpack.c.h.b16 %v151
    %v447 = vunpack.c.l.b16 %v152
    %v448 = vunpack.c.h.b16 %v152
    %v449 = vunpack.c.l.b16 %v153
    %v450 = vunpack.c.h.b16 %v153
    %v451 = vunpack.c.l.b16 %v154
    %v452 = vunpack.c.h.b16 %v154
    %v453 = vunpack.c.l.b16 %v155
    %v454 = vunpack.c.h.b16 %v155
    %v455 = vunpack.c.l.b16 %v156
    %v456 = vunpack.c.h.b16 %v156
    %v457 = vunpack.c.l.b16 %v157
    %v458 = vunpack.c.h.b16 %v157
    %v459 = vunpack.c.l.b16 %v158
    %v460 = vunpack.c.h.b16 %v158
    %v461 = vunpack.c.l.b16 %v159
    %v462 = vunpack.c.h.b16 %v159
    %v463 = vunpack.c.l.b16 %v160
    %v464 = vunpack.c.h.b16 %v160
    %v465 = vunpack.c.l.b16 %v161
    %v466 = vunpack.c.h.b16 %v161
    %v467 = vunpack.c.l.b16 %v162
    %v468 = vunpack.c.h.b16 %v162
    %v469 = vunpack.c.l.b16 %v163
    %v470 = vunpack.c.h.b16 %v163
    %v471 = vunpack.c.l.b16 %v164
    %v472 = vunpack.c.h.b16 %v164
    %v473 = vunpack.c.l.b16 %v165
    %v474 = vunpack.c.h.b16 %v165
    %v475 = vunpack.c.l.b16 %v166
    %v476 = vunpack.c.h.b16 %v166
    %v477 = vunpack.c.l.b16 %v167
    %v478 = vunpack.c.h.b16 %v167
    %v479 = vunpack.c.l.b16 %v168
    %v480 = vunpack.c.h.b16 %v168
    %v481 = vunpack.c.l.b16 %v169
    %v482 = vunpack.c.h.b16 %v169
    %v483 = vunpack.c.l.b16 %v170
    %v484 = vunpack.c.h.b16 %v170
    %v485 = vunpack.c.l.b16 %v171
    %v486 = vunpack.c.h.b16 %v171
    %v487 = vunpack.c.l.b16 %v172
    %v488 = vunpack.c.h.b16 %v172
    %v489 = vunpack.c.l.b16 %v173
    %v490 = vunpack.c.h.b16 %v173
    %v491 = vunpack.c.l.b16 %v174
    %v492 = vunpack.c.h.b16 %v174
    %v493 = vunpack.c.l.b16 %v175
    %v494 = vunpack.c.h.b16 %v175
    %v495 = vunpack.c.l.b16 %v176
    %v496 = vunpack.c.h.b16 %v176
    %v497 = vunpack.c.l.b16 %v177
    %v498 = vunpack.c.h.b16 %v177
    %v499 = vunpack.c.l.b16 %v178
    %v500 = vunpack.c.h.b16 %v178
    %v501 = vunpack.c.l.b16 %v179
    %v502 = vunpack.c.h.b16 %v179
    %v503 = vunpack.c.l.b16 %v180
    %v504 = vunpack.c.h.b16 %v180
    %v505 = vunpack.c.l.b16 %v181
    %v506 = vunpack.c.h.b16 %v181
    %v507 = vunpack.c.l.b16 %v182
    %v508 = vunpack.c.h.b16 %v182
    %v509 = vpack.c.b16 %v321, %v317
    %v510 = vpack.c.b16 %v322, %v318
    %v511 = vpack.c.b16 %v323, %v319
    %v512 = vpack.c.b16 %v324, %v320
    %v513 = vpack.c.b16 %v329, %v325
    %v514 = vpack.c.b16 %v330, %v326
    %v515 = vpack.c.b16 %v331, %v327
    %v516 = vpack.c.b16 %v332, %v328
    %v517 = vpack.c.b16 %v337, %v333
    %v518 = vpack.c.b16 %v338, %v334
    %v519 = vpack.c.b16 %v339, %v335
    %v520 = vpack.c.b16 %v340, %v336
    %v521 = vpack.c.b16 %v345, %v341
    %v522 = vpack.c.b16 %v346, %v342
    %v523 = vpack.c.b16 %v347, %v343
    %v524 = vpack.c.b16 %v348, %v344
    %v525 = vpack.c.b16 %v353, %v349
    %v526 = vpack.c.b16 %v354, %v350
    %v527 = vpack.c.b16 %v355, %v351
    %v528 = vpack.c.b16 %v356, %v352
    %v529 = vpack.c.b16 %v361, %v357
    %v530 = vpack.c.b16 %v362, %v358
    %v531 = vpack.c.b16 %v363, %v359
    %v532 = vpack.c.b16 %v364, %v360
    %v533 = vpack.c.b16 %v369, %v365
    %v534 = vpack.c.b16 %v370, %v366
    %v535 = vpack.c.b16 %v371, %v367
    %v536 = vpack.c.b16 %v372, %v368
    %v537 = vpack.c.b16 %v377, %v373
    %v538 = vpack.c.b16 %v378, %v374
    %v539 = vpack.c.b16 %v379, %v375
    %v540 = vpack.c.b16 %v380, %v376
    %v541 = vpack.c.b16 %v385, %v381
    %v542 = vpack.c.b16 %v386, %v382
    %v543 = vpack.c.b16 %v387, %v383
    %v544 = vpack.c.b16 %v388, %v384
    %v545 = vpack.c.b16 %v393, %v389
    %v546 = vpack.c.b16 %v394, %v390
    %v547 = vpack.c.b16 %v395, %v391
    %v548 = vpack.c.b16 %v396, %v392
    %v549 = vpack.c.b16 %v401, %v397
    %v550 = vpack.c.b16 %v402, %v398
    %v551 = vpack.c.b16 %v403, %v399
    %v552 = vpack.c.b16 %v404, %v400
    %v553 = vpack.c.b16 %v409, %v405
    %v554 = vpack.c.b16 %v410, %v406
    %v555 = vpack.c.b16 %v411, %v407
    %v556 = vpack.c.b16 %v412, %v408
    %v557 = vpack.c.b16 %v417, %v413
    %v558 = vpack.c.b16 %v418, %v414
    %v559 = vpack.c.b16 %v419, %v415
    %v560 = vpack.c.b16 %v420, %v416
    %v561 = vpack.c.b16 %v425, %v421
    %v562 = vpack.c.b16 %v426, %v422
    %v563 = vpack.c.b16 %v427, %v423
    %v564 = vpack.c.b16 %v428, %v424
    %v565 = vpack.c.b16 %v433, %v429
    %v566 = vpack.c.b16 %v434, %v430
    %v567 = vpack.c.b16 %v435, %v431
    %v568 = vpack.c.b16 %v436, %v432
    %v569 = vpack.c.b16 %v441, %v437
    %v570 = vpack.c.b16 %v442, %v438
    %v571 = vpack.c.b16 %v443, %v439
    %v572 = vpack.c.b16 %v444, %v440
    %v573 = vpack.c.b16 %v449, %v445
    %v574 = vpack.c.b16 %v450, %v446
    %v575 = vpack.c.b16 %v451, %v447
    %v576 = vpack.c.b16 %v452, %v448
    %v577 = vpack.c.b16 %v457, %v453
    %v578 = vpack.c.b16 %v458, %v454
    %v579 = vpack.c.b16 %v459, %v455
    %v580 = vpack.c.b16 %v460, %v456
    %v581 = vpack.c.b16 %v465, %v461
    %v582 = vpack.c.b16 %v466, %v462
    %v583 = vpack.c.b16 %v467, %v463
    %v584 = vpack.c.b16 %v468, %v464
    %v585 = vpack.c.b16 %v473, %v469
    %v586 = vpack.c.b16 %v474, %v470
    %v587 = vpack.c.b16 %v475, %v471
    %v588 = vpack.c.b16 %v476, %v472
    %v589 = vpack.c.b16 %v481, %v477
    %v590 = vpack.c.b16 %v482, %v478
    %v591 = vpack.c.b16 %v483, %v479
    %v592 = vpack.c.b16 %v484, %v480
    %v593 = vpack.c.b16 %v489, %v485
    %v594 = vpack.c.b16 %v490, %v486
    %v595 = vpack.c.b16 %v491, %v487
    %v596 = vpack.c.b16 %v492, %v488
    %v597 = vpack.c.b16 %v497, %v493
    %v598 = vpack.c.b16 %v498, %v494
    %v599 = vpack.c.b16 %v499, %v495
    %v600 = vpack.c.b16 %v500, %v496
    %v601 = vpack.c.b16 %v505, %v501
    %v602 = vpack.c.b16 %v506, %v502
    %v603 = vpack.c.b16 %v507, %v503
    %v604 = vpack.c.b16 %v508, %v504
    %701 = vmatprep.subr.bf16.mxu0 %v510
    %702 = vmatpush1.bf16.msra.mxu0 %v509
    %703 = vmatprep.subr.bf16.mxu0 %v514
    %704 = vmatpush1.bf16.msra.mxu0 %v513
    %705 = vmatprep.subr.bf16.mxu0 %v518
    %706 = vmatpush1.bf16.msra.mxu0 %v517
    %707 = vmatprep.subr.bf16.mxu0 %v522
    %708 = vmatpush1.bf16.msra.mxu0 %v521
    %709 = vmatprep.subr.bf16.mxu0 %v526
    %710 = vmatpush1.bf16.msra.mxu0 %v525
    %711 = vmatprep.subr.bf16.mxu0 %v530
    %712 = vmatpush1.bf16.msra.mxu0 %v529
    %713 = vmatprep.subr.bf16.mxu0 %v534
    %714 = vmatpush1.bf16.msra.mxu0 %v533
    %715 = vmatprep.subr.bf16.mxu0 %v538
    %716 = vmatpush1.bf16.msra.mxu0 %v537
    %717 = vmatprep.subr.bf16.mxu0 %v542
    %718 = vmatpush1.bf16.msra.mxu0 %v541
    %719 = vmatprep.subr.bf16.mxu0 %v546
    %720 = vmatpush1.bf16.msra.mxu0 %v545
    %721 = vmatprep.subr.bf16.mxu0 %v550
    %722 = vmatpush1.bf16.msra.mxu0 %v549
    %723 = vmatprep.subr.bf16.mxu0 %v554
    %724 = vmatpush1.bf16.msra.mxu0 %v553
    %725 = vmatprep.subr.bf16.mxu0 %v558
    %726 = vmatpush1.bf16.msra.mxu0 %v557
    %727 = vmatprep.subr.bf16.mxu0 %v562
    %728 = vmatpush1.bf16.msra.mxu0 %v561
    %729 = vmatprep.subr.bf16.mxu0 %v566
    %730 = vmatpush1.bf16.msra.mxu0 %v565
    %731 = vmatprep.subr.bf16.mxu0 %v570
    %732 = vmatpush1.bf16.msra.mxu0 %v569
    %733 = vmatprep.mubr.bf16.mxu0 %v216
    %734 = vmatmul.mubr.bf16.gmra.mrb[0].mxu0 %v215
    %v735 = vpop.f32.mrb[0].mxu0
    %v736 = vadd.f32 %v188, %v735
    %v737 = vpop.f32.mrb[0].mxu0
    %v738 = vadd.f32 %v192, %v737
    %v739 = vpop.f32.mrb[0].mxu0
    %v740 = vadd.f32 %v188, %v739
    %v741 = vpop.f32.mrb[0].mxu0
    %v742 = vadd.f32 %v192, %v741
    %743 = vdwg.mxu0
    %744 = vmatprep.subr.bf16.mxu0 %v574
    %745 = vmatpush1.bf16.msra.mxu0 %v573
    %746 = vmatprep.subr.bf16.mxu0 %v578
    %747 = vmatpush1.bf16.msra.mxu0 %v577
    %748 = vmatprep.subr.bf16.mxu0 %v582
    %749 = vmatpush1.bf16.msra.mxu0 %v581
    %750 = vmatprep.subr.bf16.mxu0 %v586
    %751 = vmatpush1.bf16.msra.mxu0 %v585
    %752 = vmatprep.subr.bf16.mxu0 %v590
    %753 = vmatpush1.bf16.msra.mxu0 %v589
    %754 = vmatprep.subr.bf16.mxu0 %v594
    %755 = vmatpush1.bf16.msra.mxu0 %v593
    %756 = vmatprep.subr.bf16.mxu0 %v598
    %757 = vmatpush1.bf16.msra.mxu0 %v597
    %758 = vmatprep.subr.bf16.mxu0 %v602
    %759 = vmatpush1.bf16.msra.mxu0 %v601
    %760 = vmatprep.subr.bf16.mxu0 0
    %761 = vmatpush1.bf16.msra.mxu0 0
    %762 = vmatprep.subr.bf16.mxu0 0
    %763 = vmatpush1.bf16.msra.mxu0 0
    %764 = vmatprep.subr.bf16.mxu0 0
    %765 = vmatpush1.bf16.msra.mxu0 0
    %766 = vmatprep.subr.bf16.mxu0 0
    %767 = vmatpush1.bf16.msra.mxu0 0
    %768 = vmatprep.subr.bf16.mxu0 0
    %769 = vmatpush1.bf16.msra.mxu0 0
    %770 = vmatprep.subr.bf16.mxu0 0
    %771 = vmatpush1.bf16.msra.mxu0 0
    %772 = vmatprep.subr.bf16.mxu0 0
    %773 = vmatpush1.bf16.msra.mxu0 0
    %774 = vmatprep.subr.bf16.mxu0 0
    %775 = vmatpush1.bf16.msra.mxu0 0
    %776 = vmatprep.mubr.bf16.mxu0 0
    %777 = vmatmul.mubr.bf16.gmra.mrb[0].mxu0 %v217
    %v778 = vpop.f32.mrb[0].mxu0
    %v779 = vadd.f32 %v736, %v778
    %v780 = vpop.f32.mrb[0].mxu0
    %v781 = vadd.f32 %v738, %v780
    %v782 = vpop.f32.mrb[0].mxu0
    %v783 = vadd.f32 %v740, %v782
    %v784 = vpop.f32.mrb[0].mxu0
    %v785 = vadd.f32 %v742, %v784
    %786 = vdwg.mxu0
    %787 = vmatprep.subr.bf16.mxu0 %v512
    %788 = vmatpush1.bf16.msra.mxu0 %v511
    %789 = vmatprep.subr.bf16.mxu0 %v516
    %790 = vmatpush1.bf16.msra.mxu0 %v515
    %791 = vmatprep.subr.bf16.mxu0 %v520
    %792 = vmatpush1.bf16.msra.mxu0 %v519
    %793 = vmatprep.subr.bf16.mxu0 %v524
    %794 = vmatpush1.bf16.msra.mxu0 %v523
    %795 = vmatprep.subr.bf16.mxu0 %v528
    %796 = vmatpush1.bf16.msra.mxu0 %v527
    %797 = vmatprep.subr.bf16.mxu0 %v532
    %798 = vmatpush1.bf16.msra.mxu0 %v531
    %799 = vmatprep.subr.bf16.mxu0 %v536
    %800 = vmatpush1.bf16.msra.mxu0 %v535
    %801 = vmatprep.subr.bf16.mxu0 %v540
    %802 = vmatpush1.bf16.msra.mxu0 %v539
    %803 = vmatprep.subr.bf16.mxu0 %v544
    %804 = vmatpush1.bf16.msra.mxu0 %v543
    %805 = vmatprep.subr.bf16.mxu0 %v548
    %806 = vmatpush1.bf16.msra.mxu0 %v547
    %807 = vmatprep.subr.bf16.mxu0 %v552
    %808 = vmatpush1.bf16.msra.mxu0 %v551
    %809 = vmatprep.subr.bf16.mxu0 %v556
    %810 = vmatpush1.bf16.msra.mxu0 %v555
    %811 = vmatprep.subr.bf16.mxu0 %v560
    %812 = vmatpush1.bf16.msra.mxu0 %v559
    %813 = vmatprep.subr.bf16.mxu0 %v564
    %814 = vmatpush1.bf16.msra.mxu0 %v563
    %815 = vmatprep.subr.bf16.mxu0 %v568
    %816 = vmatpush1.bf16.msra.mxu0 %v567
    %817 = vmatprep.subr.bf16.mxu0 %v572
    %818 = vmatpush1.bf16.msra.mxu0 %v571
    %819 = vmatprep.mubr.bf16.mxu0 %v216
    %820 = vmatmul.mubr.bf16.gmra.mrb[0].mxu0 %v215
    %v821 = vpop.f32.mrb[0].mxu0
    %v822 = vadd.f32 %v196, %v821
    %v823 = vpop.f32.mrb[0].mxu0
    %v824 = vadd.f32 %v200, %v823
    %v825 = vpop.f32.mrb[0].mxu0
    %v826 = vadd.f32 %v196, %v825
    %v827 = vpop.f32.mrb[0].mxu0
    %v828 = vadd.f32 %v200, %v827
    %829 = vdwg.mxu0
    %830 = vmatprep.subr.bf16.mxu0 %v576
    %831 = vmatpush1.bf16.msra.mxu0 %v575
    %832 = vmatprep.subr.bf16.mxu0 %v580
    %833 = vmatpush1.bf16.msra.mxu0 %v579
    %834 = vmatprep.subr.bf16.mxu0 %v584
    %835 = vmatpush1.bf16.msra.mxu0 %v583
    %836 = vmatprep.subr.bf16.mxu0 %v588
    %837 = vmatpush1.bf16.msra.mxu0 %v587
    %838 = vmatprep.subr.bf16.mxu0 %v592
    %839 = vmatpush1.bf16.msra.mxu0 %v591
    %840 = vmatprep.subr.bf16.mxu0 %v596
    %841 = vmatpush1.bf16.msra.mxu0 %v595
    %842 = vmatprep.subr.bf16.mxu0 %v600
    %843 = vmatpush1.bf16.msra.mxu0 %v599
    %844 = vmatprep.subr.bf16.mxu0 %v604
    %845 = vmatpush1.bf16.msra.mxu0 %v603
    %846 = vmatprep.subr.bf16.mxu0 0
    %847 = vmatpush1.bf16.msra.mxu0 0
    %848 = vmatprep.subr.bf16.mxu0 0
    %849 = vmatpush1.bf16.msra.mxu0 0
    %850 = vmatprep.subr.bf16.mxu0 0
    %851 = vmatpush1.bf16.msra.mxu0 0
    %852 = vmatprep.subr.bf16.mxu0 0
    %853 = vmatpush1.bf16.msra.mxu0 0
    %854 = vmatprep.subr.bf16.mxu0 0
    %855 = vmatpush1.bf16.msra.mxu0 0
    %856 = vmatprep.subr.bf16.mxu0 0
    %857 = vmatpush1.bf16.msra.mxu0 0
    %858 = vmatprep.subr.bf16.mxu0 0
    %859 = vmatpush1.bf16.msra.mxu0 0
    %860 = vmatprep.subr.bf16.mxu0 0
    %861 = vmatpush1.bf16.msra.mxu0 0
    %862 = vmatprep.mubr.bf16.mxu0 0
    %863 = vmatmul.mubr.bf16.gmra.mrb[0].mxu0 %v217
    %v864 = vpop.f32.mrb[0].mxu0
    %v865 = vadd.f32 %v822, %v864
    %v866 = vpop.f32.mrb[0].mxu0
    %v867 = vadd.f32 %v824, %v866
    %v868 = vpop.f32.mrb[0].mxu0
    %v869 = vadd.f32 %v826, %v868
    %v870 = vpop.f32.mrb[0].mxu0
    %v871 = vadd.f32 %v828, %v870
    %872 = vdwg.mxu0
    %v873 = vmax.f32 %v779, 0.0
    %v874 = vmax.f32 %v781, 0.0
    %v875 = vmax.f32 %v865, 0.0
    %v876 = vmax.f32 %v867, 0.0
    %v877 = vmax.f32 %v783, 0.0
    %v878 = vmax.f32 %v785, 0.0
    %v879 = vmax.f32 %v869, 0.0
    %v880 = vmax.f32 %v871, 0.0
    %v881 = vpack.c.bf16 %v877, %v873
    %v882 = vpack.c.bf16 %v878, %v874
    %v883 = vpack.c.bf16 %v879, %v875
    %v884 = vpack.c.bf16 %v880, %v876
    %885 = vst [vmem:[#allocation2] sm:$0xff] %v881
    %886 = vst [vmem:[#allocation2 + $0x8] sm:$0xff] %v882
    %887 = vst [vmem:[#allocation2 + $0x10] sm:$0xff] %v883
    %888 = vst [vmem:[#allocation2 + $0x18] sm:$0xff] %v884
    %v889 = vld [vmem:[#allocation2] sm:$0xff]
    %v890 = vld [vmem:[#allocation2 + $0x8] sm:$0xff]
    %v891 = vld [vmem:[#allocation2 + $0x10] sm:$0xff]
    %v892 = vld [vmem:[#allocation2 + $0x18] sm:$0xff]
    %v893 = vld [vmem:[#allocation9] sm:$0xff]
    %v894 = vld [vmem:[#allocation9 + $0x8] sm:$0xff]
    %v895 = vld [vmem:[#allocation9 + $0x10] sm:$0xff]
    %v896 = vld [vmem:[#allocation9 + $0x18] sm:$0xff]
    %v897 = vld [vmem:[#allocation9 + $0x20] sm:$0xff]
    %v898 = vld [vmem:[#allocation9 + $0x28] sm:$0xff]
    %v899 = vld [vmem:[#allocation9 + $0x30] sm:$0xff]
    %v900 = vld [vmem:[#allocation9 + $0x38] sm:$0xff]
    %v901 = vld [vmem:[#allocation9 + $0x40] sm:$0xff]
    %v902 = vld [vmem:[#allocation9 + $0x48] sm:$0xff]
    %v903 = vld [vmem:[#allocation9 + $0x50] sm:$0xff]
    %v904 = vld [vmem:[#allocation9 + $0x58] sm:$0xff]
    %v905 = vld [vmem:[#allocation9 + $0x60] sm:$0xff]
    %v906 = vld [vmem:[#allocation9 + $0x68] sm:$0xff]
    %v907 = vld [vmem:[#allocation9 + $0x70] sm:$0xff]
    %v908 = vld [vmem:[#allocation9 + $0x78] sm:$0xff]
    %v909 = vld [vmem:[#allocation9 + $0x80] sm:$0xff]
    %v910 = vld [vmem:[#allocation9 + $0x88] sm:$0xff]
    %v911 = vld [vmem:[#allocation9 + $0x90] sm:$0xff]
    %v912 = vld [vmem:[#allocation9 + $0x98] sm:$0xff]
    %v913 = vld [vmem:[#allocation9 + $0xa0] sm:$0xff]
    %v914 = vld [vmem:[#allocation9 + $0xa8] sm:$0xff]
    %v915 = vld [vmem:[#allocation9 + $0xb0] sm:$0xff]
    %v916 = vld [vmem:[#allocation9 + $0xb8] sm:$0xff]
    %v917 = vld [vmem:[#allocation9 + $0xc0] sm:$0xff]
    %v918 = vld [vmem:[#allocation9 + $0xc8] sm:$0xff]
    %v919 = vld [vmem:[#allocation9 + $0xd0] sm:$0xff]
    %v920 = vld [vmem:[#allocation9 + $0xd8] sm:$0xff]
    %v921 = vld [vmem:[#allocation9 + $0xe0] sm:$0xff]
    %v922 = vld [vmem:[#allocation9 + $0xe8] sm:$0xff]
    %v923 = vld [vmem:[#allocation9 + $0xf0] sm:$0xff]
    %v924 = vld [vmem:[#allocation9 + $0xf8] sm:$0xff]
    %v925 = vld [vmem:[#allocation9 + $0x100] sm:$0xff]
    %v926 = vld [vmem:[#allocation9 + $0x108] sm:$0xff]
    %v927 = vld [vmem:[#allocation9 + $0x110] sm:$0xff]
    %v928 = vld [vmem:[#allocation9 + $0x118] sm:$0xff]
    %v929 = vld [vmem:[#allocation9 + $0x120] sm:$0xff]
    %v930 = vld [vmem:[#allocation9 + $0x128] sm:$0xff]
    %v931 = vld [vmem:[#allocation9 + $0x130] sm:$0xff]
    %v932 = vld [vmem:[#allocation9 + $0x138] sm:$0xff]
    %v933 = vld [vmem:[#allocation9 + $0x140] sm:$0xff]
    %v934 = vld [vmem:[#allocation9 + $0x148] sm:$0xff]
    %v935 = vld [vmem:[#allocation9 + $0x150] sm:$0xff]
    %v936 = vld [vmem:[#allocation9 + $0x158] sm:$0xff]
    %v937 = vld [vmem:[#allocation9 + $0x160] sm:$0xff]
    %v938 = vld [vmem:[#allocation9 + $0x168] sm:$0xff]
    %v939 = vld [vmem:[#allocation9 + $0x170] sm:$0xff]
    %v940 = vld [vmem:[#allocation9 + $0x178] sm:$0xff]
    %v941 = vld [vmem:[#allocation9 + $0x180] sm:$0xff]
    %v942 = vld [vmem:[#allocation9 + $0x188] sm:$0xff]
    %v943 = vld [vmem:[#allocation9 + $0x190] sm:$0xff]
    %v944 = vld [vmem:[#allocation9 + $0x198] sm:$0xff]
    %v945 = vld [vmem:[#allocation9 + $0x1a0] sm:$0xff]
    %v946 = vld [vmem:[#allocation9 + $0x1a8] sm:$0xff]
    %v947 = vld [vmem:[#allocation9 + $0x1b0] sm:$0xff]
    %v948 = vld [vmem:[#allocation9 + $0x1b8] sm:$0xff]
    %v949 = vld [vmem:[#allocation9 + $0x1c0] sm:$0xff]
    %v950 = vld [vmem:[#allocation9 + $0x1c8] sm:$0xff]
    %v951 = vld [vmem:[#allocation9 + $0x1d0] sm:$0xff]
    %v952 = vld [vmem:[#allocation9 + $0x1d8] sm:$0xff]
    %v953 = vld [vmem:[#allocation9 + $0x1e0] sm:$0xff]
    %v954 = vld [vmem:[#allocation9 + $0x1e8] sm:$0xff]
    %v955 = vld [vmem:[#allocation9 + $0x1f0] sm:$0xff]
    %v956 = vld [vmem:[#allocation9 + $0x1f8] sm:$0xff]
    %v957 = vld [vmem:[#allocation9 + $0x200] sm:$0xff]
    %v958 = vld [vmem:[#allocation9 + $0x208] sm:$0xff]
    %v959 = vld [vmem:[#allocation9 + $0x210] sm:$0xff]
    %v960 = vld [vmem:[#allocation9 + $0x218] sm:$0xff]
    %v961 = vld [vmem:[#allocation9 + $0x220] sm:$0xff]
    %v962 = vld [vmem:[#allocation9 + $0x228] sm:$0xff]
    %v963 = vld [vmem:[#allocation9 + $0x230] sm:$0xff]
    %v964 = vld [vmem:[#allocation9 + $0x238] sm:$0xff]
    %v965 = vld [vmem:[#allocation9 + $0x240] sm:$0xff]
    %v966 = vld [vmem:[#allocation9 + $0x248] sm:$0xff]
    %v967 = vld [vmem:[#allocation9 + $0x250] sm:$0xff]
    %v968 = vld [vmem:[#allocation9 + $0x258] sm:$0xff]
    %v969 = vld [vmem:[#allocation9 + $0x260] sm:$0xff]
    %v970 = vld [vmem:[#allocation9 + $0x268] sm:$0xff]
    %v971 = vld [vmem:[#allocation9 + $0x270] sm:$0xff]
    %v972 = vld [vmem:[#allocation9 + $0x278] sm:$0xff]
    %v973 = vld [vmem:[#allocation9 + $0x280] sm:$0xff]
    %v974 = vld [vmem:[#allocation9 + $0x288] sm:$0xff]
    %v975 = vld [vmem:[#allocation9 + $0x290] sm:$0xff]
    %v976 = vld [vmem:[#allocation9 + $0x298] sm:$0xff]
    %v977 = vld [vmem:[#allocation9 + $0x2a0] sm:$0xff]
    %v978 = vld [vmem:[#allocation9 + $0x2a8] sm:$0xff]
    %v979 = vld [vmem:[#allocation9 + $0x2b0] sm:$0xff]
    %v980 = vld [vmem:[#allocation9 + $0x2b8] sm:$0xff]
    %v981 = vld [vmem:[#allocation9 + $0x2c0] sm:$0xff]
    %v982 = vld [vmem:[#allocation9 + $0x2c8] sm:$0xff]
    %v983 = vld [vmem:[#allocation9 + $0x2d0] sm:$0xff]
    %v984 = vld [vmem:[#allocation9 + $0x2d8] sm:$0xff]
    %v985 = vld [vmem:[#allocation9 + $0x2e0] sm:$0xff]
    %v986 = vld [vmem:[#allocation9 + $0x2e8] sm:$0xff]
    %v987 = vld [vmem:[#allocation9 + $0x2f0] sm:$0xff]
    %v988 = vld [vmem:[#allocation9 + $0x2f8] sm:$0xff]
    %v989 = vld [vmem:[#allocation9 + $0x300] sm:$0xff]
    %v990 = vld [vmem:[#allocation9 + $0x308] sm:$0xff]
    %v991 = vld [vmem:[#allocation9 + $0x310] sm:$0xff]
    %v992 = vld [vmem:[#allocation9 + $0x318] sm:$0xff]
    %v993 = vld [vmem:[#allocation9 + $0x320] sm:$0xff]
    %v994 = vld [vmem:[#allocation9 + $0x328] sm:$0xff]
    %v995 = vld [vmem:[#allocation9 + $0x330] sm:$0xff]
    %v996 = vld [vmem:[#allocation9 + $0x338] sm:$0xff]
    %v997 = vld [vmem:[#allocation9 + $0x340] sm:$0xff]
    %v998 = vld [vmem:[#allocation9 + $0x348] sm:$0xff]
    %v999 = vld [vmem:[#allocation9 + $0x350] sm:$0xff]
    %v1000 = vld [vmem:[#allocation9 + $0x358] sm:$0xff]
    %v1001 = vld [vmem:[#allocation9 + $0x360] sm:$0xff]
    %v1002 = vld [vmem:[#allocation9 + $0x368] sm:$0xff]
    %v1003 = vld [vmem:[#allocation9 + $0x370] sm:$0xff]
    %v1004 = vld [vmem:[#allocation9 + $0x378] sm:$0xff]
    %v1005 = vld [vmem:[#allocation9 + $0x380] sm:$0xff]
    %v1006 = vld [vmem:[#allocation9 + $0x388] sm:$0xff]
    %v1007 = vld [vmem:[#allocation9 + $0x390] sm:$0xff]
    %v1008 = vld [vmem:[#allocation9 + $0x398] sm:$0xff]
    %v1009 = vld [vmem:[#allocation9 + $0x3a0] sm:$0xff]
    %v1010 = vld [vmem:[#allocation9 + $0x3a8] sm:$0xff]
    %v1011 = vld [vmem:[#allocation9 + $0x3b0] sm:$0xff]
    %v1012 = vld [vmem:[#allocation9 + $0x3b8] sm:$0xff]
    %v1013 = vld [vmem:[#allocation9 + $0x3c0] sm:$0xff]
    %v1014 = vld [vmem:[#allocation9 + $0x3c8] sm:$0xff]
    %v1015 = vld [vmem:[#allocation9 + $0x3d0] sm:$0xff]
    %v1016 = vld [vmem:[#allocation9 + $0x3d8] sm:$0xff]
    %v1017 = vld [vmem:[#allocation9 + $0x3e0] sm:$0xff]
    %v1018 = vld [vmem:[#allocation9 + $0x3e8] sm:$0xff]
    %v1019 = vld [vmem:[#allocation9 + $0x3f0] sm:$0xff]
    %v1020 = vld [vmem:[#allocation9 + $0x3f8] sm:$0xff]
    %v1021 = vld [vmem:[#allocation9 + $0x400] sm:$0xff]
    %v1022 = vld [vmem:[#allocation9 + $0x408] sm:$0xff]
    %v1023 = vld [vmem:[#allocation9 + $0x410] sm:$0xff]
    %v1024 = vld [vmem:[#allocation9 + $0x418] sm:$0xff]
    %v1025 = vld [vmem:[#allocation9 + $0x420] sm:$0xff]
    %v1026 = vld [vmem:[#allocation9 + $0x428] sm:$0xff]
    %v1027 = vld [vmem:[#allocation9 + $0x430] sm:$0xff]
    %v1028 = vld [vmem:[#allocation9 + $0x438] sm:$0xff]
    %v1029 = vld [vmem:[#allocation9 + $0x440] sm:$0xff]
    %v1030 = vld [vmem:[#allocation9 + $0x448] sm:$0xff]
    %v1031 = vld [vmem:[#allocation9 + $0x450] sm:$0xff]
    %v1032 = vld [vmem:[#allocation9 + $0x458] sm:$0xff]
    %v1033 = vld [vmem:[#allocation9 + $0x460] sm:$0xff]
    %v1034 = vld [vmem:[#allocation9 + $0x468] sm:$0xff]
    %v1035 = vld [vmem:[#allocation9 + $0x470] sm:$0xff]
    %v1036 = vld [vmem:[#allocation9 + $0x478] sm:$0xff]
    %v1037 = vld [vmem:[#allocation9 + $0x480] sm:$0xff]
    %v1038 = vld [vmem:[#allocation9 + $0x488] sm:$0xff]
    %v1039 = vld [vmem:[#allocation9 + $0x490] sm:$0xff]
    %v1040 = vld [vmem:[#allocation9 + $0x498] sm:$0xff]
    %v1041 = vld [vmem:[#allocation9 + $0x4a0] sm:$0xff]
    %v1042 = vld [vmem:[#allocation9 + $0x4a8] sm:$0xff]
    %v1043 = vld [vmem:[#allocation9 + $0x4b0] sm:$0xff]
    %v1044 = vld [vmem:[#allocation9 + $0x4b8] sm:$0xff]
    %v1045 = vld [vmem:[#allocation9 + $0x4c0] sm:$0xff]
    %v1046 = vld [vmem:[#allocation9 + $0x4c8] sm:$0xff]
    %v1047 = vld [vmem:[#allocation9 + $0x4d0] sm:$0xff]
    %v1048 = vld [vmem:[#allocation9 + $0x4d8] sm:$0xff]
    %v1049 = vld [vmem:[#allocation9 + $0x4e0] sm:$0xff]
    %v1050 = vld [vmem:[#allocation9 + $0x4e8] sm:$0xff]
    %v1051 = vld [vmem:[#allocation9 + $0x4f0] sm:$0xff]
    %v1052 = vld [vmem:[#allocation9 + $0x4f8] sm:$0xff]
    %v1053 = vld [vmem:[#allocation9 + $0x500] sm:$0xff]
    %v1054 = vld [vmem:[#allocation9 + $0x508] sm:$0xff]
    %v1055 = vld [vmem:[#allocation9 + $0x510] sm:$0xff]
    %v1056 = vld [vmem:[#allocation9 + $0x518] sm:$0xff]
    %v1057 = vld [vmem:[#allocation9 + $0x520] sm:$0xff]
    %v1058 = vld [vmem:[#allocation9 + $0x528] sm:$0xff]
    %v1059 = vld [vmem:[#allocation9 + $0x530] sm:$0xff]
    %v1060 = vld [vmem:[#allocation9 + $0x538] sm:$0xff]
    %v1061 = vld [vmem:[#allocation9 + $0x540] sm:$0xff]
    %v1062 = vld [vmem:[#allocation9 + $0x548] sm:$0xff]
    %v1063 = vld [vmem:[#allocation9 + $0x550] sm:$0xff]
    %v1064 = vld [vmem:[#allocation9 + $0x558] sm:$0xff]
    %v1065 = vld [vmem:[#allocation9 + $0x560] sm:$0xff]
    %v1066 = vld [vmem:[#allocation9 + $0x568] sm:$0xff]
    %v1067 = vld [vmem:[#allocation9 + $0x570] sm:$0xff]
    %v1068 = vld [vmem:[#allocation9 + $0x578] sm:$0xff]
    %v1069 = vld [vmem:[#allocation9 + $0x580] sm:$0xff]
    %v1070 = vld [vmem:[#allocation9 + $0x588] sm:$0xff]
    %v1071 = vld [vmem:[#allocation9 + $0x590] sm:$0xff]
    %v1072 = vld [vmem:[#allocation9 + $0x598] sm:$0xff]
    %v1073 = vld [vmem:[#allocation9 + $0x5a0] sm:$0xff]
    %v1074 = vld [vmem:[#allocation9 + $0x5a8] sm:$0xff]
    %v1075 = vld [vmem:[#allocation9 + $0x5b0] sm:$0xff]
    %v1076 = vld [vmem:[#allocation9 + $0x5b8] sm:$0xff]
    %v1077 = vld [vmem:[#allocation9 + $0x5c0] sm:$0xff]
    %v1078 = vld [vmem:[#allocation9 + $0x5c8] sm:$0xff]
    %v1079 = vld [vmem:[#allocation9 + $0x5d0] sm:$0xff]
    %v1080 = vld [vmem:[#allocation9 + $0x5d8] sm:$0xff]
    %v1081 = vld [vmem:[#allocation9 + $0x5e0] sm:$0xff]
    %v1082 = vld [vmem:[#allocation9 + $0x5e8] sm:$0xff]
    %v1083 = vld [vmem:[#allocation9 + $0x5f0] sm:$0xff]
    %v1084 = vld [vmem:[#allocation9 + $0x5f8] sm:$0xff]
    %v1085 = vld [vmem:[#allocation9 + $0x600] sm:$0xff]
    %v1086 = vld [vmem:[#allocation9 + $0x608] sm:$0xff]
    %v1087 = vld [vmem:[#allocation9 + $0x610] sm:$0xff]
    %v1088 = vld [vmem:[#allocation9 + $0x618] sm:$0xff]
    %v1089 = vld [vmem:[#allocation9 + $0x620] sm:$0xff]
    %v1090 = vld [vmem:[#allocation9 + $0x628] sm:$0xff]
    %v1091 = vld [vmem:[#allocation9 + $0x630] sm:$0xff]
    %v1092 = vld [vmem:[#allocation9 + $0x638] sm:$0xff]
    %v1093 = vld [vmem:[#allocation9 + $0x640] sm:$0xff]
    %v1094 = vld [vmem:[#allocation9 + $0x648] sm:$0xff]
    %v1095 = vld [vmem:[#allocation9 + $0x650] sm:$0xff]
    %v1096 = vld [vmem:[#allocation9 + $0x658] sm:$0xff]
    %v1097 = vld [vmem:[#allocation9 + $0x660] sm:$0xff]
    %v1098 = vld [vmem:[#allocation9 + $0x668] sm:$0xff]
    %v1099 = vld [vmem:[#allocation9 + $0x670] sm:$0xff]
    %v1100 = vld [vmem:[#allocation9 + $0x678] sm:$0xff]
    %v1101 = vld [vmem:[#allocation9 + $0x680] sm:$0xff]
    %v1102 = vld [vmem:[#allocation9 + $0x688] sm:$0xff]
    %v1103 = vld [vmem:[#allocation9 + $0x690] sm:$0xff]
    %v1104 = vld [vmem:[#allocation9 + $0x698] sm:$0xff]
    %v1105 = vld [vmem:[#allocation9 + $0x6a0] sm:$0xff]
    %v1106 = vld [vmem:[#allocation9 + $0x6a8] sm:$0xff]
    %v1107 = vld [vmem:[#allocation9 + $0x6b0] sm:$0xff]
    %v1108 = vld [vmem:[#allocation9 + $0x6b8] sm:$0xff]
    %v1109 = vld [vmem:[#allocation9 + $0x6c0] sm:$0xff]
    %v1110 = vld [vmem:[#allocation9 + $0x6c8] sm:$0xff]
    %v1111 = vld [vmem:[#allocation9 + $0x6d0] sm:$0xff]
    %v1112 = vld [vmem:[#allocation9 + $0x6d8] sm:$0xff]
    %v1113 = vld [vmem:[#allocation9 + $0x6e0] sm:$0xff]
    %v1114 = vld [vmem:[#allocation9 + $0x6e8] sm:$0xff]
    %v1115 = vld [vmem:[#allocation9 + $0x6f0] sm:$0xff]
    %v1116 = vld [vmem:[#allocation9 + $0x6f8] sm:$0xff]
    %v1117 = vld [vmem:[#allocation9 + $0x700] sm:$0xff]
    %v1118 = vld [vmem:[#allocation9 + $0x708] sm:$0xff]
    %v1119 = vld [vmem:[#allocation9 + $0x710] sm:$0xff]
    %v1120 = vld [vmem:[#allocation9 + $0x718] sm:$0xff]
    %v1121 = vld [vmem:[#allocation9 + $0x720] sm:$0xff]
    %v1122 = vld [vmem:[#allocation9 + $0x728] sm:$0xff]
    %v1123 = vld [vmem:[#allocation9 + $0x730] sm:$0xff]
    %v1124 = vld [vmem:[#allocation9 + $0x738] sm:$0xff]
    %v1125 = vld [vmem:[#allocation9 + $0x740] sm:$0xff]
    %v1126 = vld [vmem:[#allocation9 + $0x748] sm:$0xff]
    %v1127 = vld [vmem:[#allocation9 + $0x750] sm:$0xff]
    %v1128 = vld [vmem:[#allocation9 + $0x758] sm:$0xff]
    %v1129 = vld [vmem:[#allocation9 + $0x760] sm:$0xff]
    %v1130 = vld [vmem:[#allocation9 + $0x768] sm:$0xff]
    %v1131 = vld [vmem:[#allocation9 + $0x770] sm:$0xff]
    %v1132 = vld [vmem:[#allocation9 + $0x778] sm:$0xff]
    %v1133 = vld [vmem:[#allocation9 + $0x780] sm:$0xff]
    %v1134 = vld [vmem:[#allocation9 + $0x788] sm:$0xff]
    %v1135 = vld [vmem:[#allocation9 + $0x790] sm:$0xff]
    %v1136 = vld [vmem:[#allocation9 + $0x798] sm:$0xff]
    %v1137 = vld [vmem:[#allocation9 + $0x7a0] sm:$0xff]
    %v1138 = vld [vmem:[#allocation9 + $0x7a8] sm:$0xff]
    %v1139 = vld [vmem:[#allocation9 + $0x7b0] sm:$0xff]
    %v1140 = vld [vmem:[#allocation9 + $0x7b8] sm:$0xff]
    %v1141 = vld [vmem:[#allocation9 + $0x7c0] sm:$0xff]
    %v1142 = vld [vmem:[#allocation9 + $0x7c8] sm:$0xff]
    %v1143 = vld [vmem:[#allocation9 + $0x7d0] sm:$0xff]
    %v1144 = vld [vmem:[#allocation9 + $0x7d8] sm:$0xff]
    %v1145 = vld [vmem:[#allocation9 + $0x7e0] sm:$0xff]
    %v1146 = vld [vmem:[#allocation9 + $0x7e8] sm:$0xff]
    %v1147 = vld [vmem:[#allocation9 + $0x7f0] sm:$0xff]
    %v1148 = vld [vmem:[#allocation9 + $0x7f8] sm:$0xff]
    %v1149 = vld [vmem:[%s4] sm:$0xff]
    %v1151 = vlaneseq
    %v1152 = vshrl.u32 %v1151, 7
    %v1153 = vsub.s32 0, %v1152
    %v1154 = vrot.slane %v1149, %v1153
    %v1155 = vlaneseq
    %v1156 = vshrl.u32 %v1155, 7
    %v1157 = vsub.s32 1, %v1156
    %v1158 = vrot.slane %v1149, %v1157
    %v1159 = vlaneseq
    %v1160 = vshrl.u32 %v1159, 7
    %v1161 = vsub.s32 2, %v1160
    %v1162 = vrot.slane %v1149, %v1161
    %v1163 = vlaneseq
    %v1164 = vshrl.u32 %v1163, 7
    %v1165 = vsub.s32 3, %v1164
    %v1166 = vrot.slane %v1149, %v1165
    %v1167 = vlaneseq
    %v1168 = vshrl.u32 %v1167, 7
    %v1169 = vsub.s32 4, %v1168
    %v1170 = vrot.slane %v1149, %v1169
    %v1171 = vlaneseq
    %v1172 = vshrl.u32 %v1171, 7
    %v1173 = vsub.s32 5, %v1172
    %v1174 = vrot.slane %v1149, %v1173
    %v1175 = vlaneseq
    %v1176 = vshrl.u32 %v1175, 7
    %v1177 = vsub.s32 6, %v1176
    %v1178 = vrot.slane %v1149, %v1177
    %v1179 = vlaneseq
    %v1180 = vshrl.u32 %v1179, 7
    %v1181 = vsub.s32 7, %v1180
    %v1182 = vrot.slane %v1149, %v1181
    %v1447 = vunpack.c.l.b16 %v893
    %v1448 = vunpack.c.h.b16 %v893
    %v1449 = vunpack.c.l.b16 %v894
    %v1450 = vunpack.c.h.b16 %v894
    %v1451 = vunpack.c.l.b16 %v895
    %v1452 = vunpack.c.h.b16 %v895
    %v1453 = vunpack.c.l.b16 %v896
    %v1454 = vunpack.c.h.b16 %v896
    %v1455 = vunpack.c.l.b16 %v897
    %v1456 = vunpack.c.h.b16 %v897
    %v1457 = vunpack.c.l.b16 %v898
    %v1458 = vunpack.c.h.b16 %v898
    %v1459 = vunpack.c.l.b16 %v899
    %v1460 = vunpack.c.h.b16 %v899
    %v1461 = vunpack.c.l.b16 %v900
    %v1462 = vunpack.c.h.b16 %v900
    %v1463 = vunpack.c.l.b16 %v901
    %v1464 = vunpack.c.h.b16 %v901
    %v1465 = vunpack.c.l.b16 %v902
    %v1466 = vunpack.c.h.b16 %v902
    %v1467 = vunpack.c.l.b16 %v903
    %v1468 = vunpack.c.h.b16 %v903
    %v1469 = vunpack.c.l.b16 %v904
    %v1470 = vunpack.c.h.b16 %v904
    %v1471 = vunpack.c.l.b16 %v905
    %v1472 = vunpack.c.h.b16 %v905
    %v1473 = vunpack.c.l.b16 %v906
    %v1474 = vunpack.c.h.b16 %v906
    %v1475 = vunpack.c.l.b16 %v907
    %v1476 = vunpack.c.h.b16 %v907
    %v1477 = vunpack.c.l.b16 %v908
    %v1478 = vunpack.c.h.b16 %v908
    %v1479 = vunpack.c.l.b16 %v909
    %v1480 = vunpack.c.h.b16 %v909
    %v1481 = vunpack.c.l.b16 %v910
    %v1482 = vunpack.c.h.b16 %v910
    %v1483 = vunpack.c.l.b16 %v911
    %v1484 = vunpack.c.h.b16 %v911
    %v1485 = vunpack.c.l.b16 %v912
    %v1486 = vunpack.c.h.b16 %v912
    %v1487 = vunpack.c.l.b16 %v913
    %v1488 = vunpack.c.h.b16 %v913
    %v1489 = vunpack.c.l.b16 %v914
    %v1490 = vunpack.c.h.b16 %v914
    %v1491 = vunpack.c.l.b16 %v915
    %v1492 = vunpack.c.h.b16 %v915
    %v1493 = vunpack.c.l.b16 %v916
    %v1494 = vunpack.c.h.b16 %v916
    %v1495 = vunpack.c.l.b16 %v917
    %v1496 = vunpack.c.h.b16 %v917
    %v1497 = vunpack.c.l.b16 %v918
    %v1498 = vunpack.c.h.b16 %v918
    %v1499 = vunpack.c.l.b16 %v919
    %v1500 = vunpack.c.h.b16 %v919
    %v1501 = vunpack.c.l.b16 %v920
    %v1502 = vunpack.c.h.b16 %v920
    %v1503 = vunpack.c.l.b16 %v921
    %v1504 = vunpack.c.h.b16 %v921
    %v1505 = vunpack.c.l.b16 %v922
    %v1506 = vunpack.c.h.b16 %v922
    %v1507 = vunpack.c.l.b16 %v923
    %v1508 = vunpack.c.h.b16 %v923
    %v1509 = vunpack.c.l.b16 %v924
    %v1510 = vunpack.c.h.b16 %v924
    %v1511 = vunpack.c.l.b16 %v925
    %v1512 = vunpack.c.h.b16 %v925
    %v1513 = vunpack.c.l.b16 %v926
    %v1514 = vunpack.c.h.b16 %v926
    %v1515 = vunpack.c.l.b16 %v927
    %v1516 = vunpack.c.h.b16 %v927
    %v1517 = vunpack.c.l.b16 %v928
    %v1518 = vunpack.c.h.b16 %v928
    %v1519 = vunpack.c.l.b16 %v929
    %v1520 = vunpack.c.h.b16 %v929
    %v1521 = vunpack.c.l.b16 %v930
    %v1522 = vunpack.c.h.b16 %v930
    %v1523 = vunpack.c.l.b16 %v931
    %v1524 = vunpack.c.h.b16 %v931
    %v1525 = vunpack.c.l.b16 %v932
    %v1526 = vunpack.c.h.b16 %v932
    %v1527 = vunpack.c.l.b16 %v933
    %v1528 = vunpack.c.h.b16 %v933
    %v1529 = vunpack.c.l.b16 %v934
    %v1530 = vunpack.c.h.b16 %v934
    %v1531 = vunpack.c.l.b16 %v935
    %v1532 = vunpack.c.h.b16 %v935
    %v1533 = vunpack.c.l.b16 %v936
    %v1534 = vunpack.c.h.b16 %v936
    %v1535 = vunpack.c.l.b16 %v937
    %v1536 = vunpack.c.h.b16 %v937
    %v1537 = vunpack.c.l.b16 %v938
    %v1538 = vunpack.c.h.b16 %v938
    %v1539 = vunpack.c.l.b16 %v939
    %v1540 = vunpack.c.h.b16 %v939
    %v1541 = vunpack.c.l.b16 %v940
    %v1542 = vunpack.c.h.b16 %v940
    %v1543 = vunpack.c.l.b16 %v941
    %v1544 = vunpack.c.h.b16 %v941
    %v1545 = vunpack.c.l.b16 %v942
    %v1546 = vunpack.c.h.b16 %v942
    %v1547 = vunpack.c.l.b16 %v943
    %v1548 = vunpack.c.h.b16 %v943
    %v1549 = vunpack.c.l.b16 %v944
    %v1550 = vunpack.c.h.b16 %v944
    %v1551 = vunpack.c.l.b16 %v945
    %v1552 = vunpack.c.h.b16 %v945
    %v1553 = vunpack.c.l.b16 %v946
    %v1554 = vunpack.c.h.b16 %v946
    %v1555 = vunpack.c.l.b16 %v947
    %v1556 = vunpack.c.h.b16 %v947
    %v1557 = vunpack.c.l.b16 %v948
    %v1558 = vunpack.c.h.b16 %v948
    %v1559 = vunpack.c.l.b16 %v949
    %v1560 = vunpack.c.h.b16 %v949
    %v1561 = vunpack.c.l.b16 %v950
    %v1562 = vunpack.c.h.b16 %v950
    %v1563 = vunpack.c.l.b16 %v951
    %v1564 = vunpack.c.h.b16 %v951
    %v1565 = vunpack.c.l.b16 %v952
    %v1566 = vunpack.c.h.b16 %v952
    %v1567 = vunpack.c.l.b16 %v953
    %v1568 = vunpack.c.h.b16 %v953
    %v1569 = vunpack.c.l.b16 %v954
    %v1570 = vunpack.c.h.b16 %v954
    %v1571 = vunpack.c.l.b16 %v955
    %v1572 = vunpack.c.h.b16 %v955
    %v1573 = vunpack.c.l.b16 %v956
    %v1574 = vunpack.c.h.b16 %v956
    %v1575 = vunpack.c.l.b16 %v957
    %v1576 = vunpack.c.h.b16 %v957
    %v1577 = vunpack.c.l.b16 %v958
    %v1578 = vunpack.c.h.b16 %v958
    %v1579 = vunpack.c.l.b16 %v959
    %v1580 = vunpack.c.h.b16 %v959
    %v1581 = vunpack.c.l.b16 %v960
    %v1582 = vunpack.c.h.b16 %v960
    %v1583 = vunpack.c.l.b16 %v961
    %v1584 = vunpack.c.h.b16 %v961
    %v1585 = vunpack.c.l.b16 %v962
    %v1586 = vunpack.c.h.b16 %v962
    %v1587 = vunpack.c.l.b16 %v963
    %v1588 = vunpack.c.h.b16 %v963
    %v1589 = vunpack.c.l.b16 %v964
    %v1590 = vunpack.c.h.b16 %v964
    %v1591 = vunpack.c.l.b16 %v965
    %v1592 = vunpack.c.h.b16 %v965
    %v1593 = vunpack.c.l.b16 %v966
    %v1594 = vunpack.c.h.b16 %v966
    %v1595 = vunpack.c.l.b16 %v967
    %v1596 = vunpack.c.h.b16 %v967
    %v1597 = vunpack.c.l.b16 %v968
    %v1598 = vunpack.c.h.b16 %v968
    %v1599 = vunpack.c.l.b16 %v969
    %v1600 = vunpack.c.h.b16 %v969
    %v1601 = vunpack.c.l.b16 %v970
    %v1602 = vunpack.c.h.b16 %v970
    %v1603 = vunpack.c.l.b16 %v971
    %v1604 = vunpack.c.h.b16 %v971
    %v1605 = vunpack.c.l.b16 %v972
    %v1606 = vunpack.c.h.b16 %v972
    %v1607 = vunpack.c.l.b16 %v973
    %v1608 = vunpack.c.h.b16 %v973
    %v1609 = vunpack.c.l.b16 %v974
    %v1610 = vunpack.c.h.b16 %v974
    %v1611 = vunpack.c.l.b16 %v975
    %v1612 = vunpack.c.h.b16 %v975
    %v1613 = vunpack.c.l.b16 %v976
    %v1614 = vunpack.c.h.b16 %v976
    %v1615 = vunpack.c.l.b16 %v977
    %v1616 = vunpack.c.h.b16 %v977
    %v1617 = vunpack.c.l.b16 %v978
    %v1618 = vunpack.c.h.b16 %v978
    %v1619 = vunpack.c.l.b16 %v979
    %v1620 = vunpack.c.h.b16 %v979
    %v1621 = vunpack.c.l.b16 %v980
    %v1622 = vunpack.c.h.b16 %v980
    %v1623 = vunpack.c.l.b16 %v981
    %v1624 = vunpack.c.h.b16 %v981
    %v1625 = vunpack.c.l.b16 %v982
    %v1626 = vunpack.c.h.b16 %v982
    %v1627 = vunpack.c.l.b16 %v983
    %v1628 = vunpack.c.h.b16 %v983
    %v1629 = vunpack.c.l.b16 %v984
    %v1630 = vunpack.c.h.b16 %v984
    %v1631 = vunpack.c.l.b16 %v985
    %v1632 = vunpack.c.h.b16 %v985
    %v1633 = vunpack.c.l.b16 %v986
    %v1634 = vunpack.c.h.b16 %v986
    %v1635 = vunpack.c.l.b16 %v987
    %v1636 = vunpack.c.h.b16 %v987
    %v1637 = vunpack.c.l.b16 %v988
    %v1638 = vunpack.c.h.b16 %v988
    %v1639 = vunpack.c.l.b16 %v989
    %v1640 = vunpack.c.h.b16 %v989
    %v1641 = vunpack.c.l.b16 %v990
    %v1642 = vunpack.c.h.b16 %v990
    %v1643 = vunpack.c.l.b16 %v991
    %v1644 = vunpack.c.h.b16 %v991
    %v1645 = vunpack.c.l.b16 %v992
    %v1646 = vunpack.c.h.b16 %v992
    %v1647 = vunpack.c.l.b16 %v993
    %v1648 = vunpack.c.h.b16 %v993
    %v1649 = vunpack.c.l.b16 %v994
    %v1650 = vunpack.c.h.b16 %v994
    %v1651 = vunpack.c.l.b16 %v995
    %v1652 = vunpack.c.h.b16 %v995
    %v1653 = vunpack.c.l.b16 %v996
    %v1654 = vunpack.c.h.b16 %v996
    %v1655 = vunpack.c.l.b16 %v997
    %v1656 = vunpack.c.h.b16 %v997
    %v1657 = vunpack.c.l.b16 %v998
    %v1658 = vunpack.c.h.b16 %v998
    %v1659 = vunpack.c.l.b16 %v999
    %v1660 = vunpack.c.h.b16 %v999
    %v1661 = vunpack.c.l.b16 %v1000
    %v1662 = vunpack.c.h.b16 %v1000
    %v1663 = vunpack.c.l.b16 %v1001
    %v1664 = vunpack.c.h.b16 %v1001
    %v1665 = vunpack.c.l.b16 %v1002
    %v1666 = vunpack.c.h.b16 %v1002
    %v1667 = vunpack.c.l.b16 %v1003
    %v1668 = vunpack.c.h.b16 %v1003
    %v1669 = vunpack.c.l.b16 %v1004
    %v1670 = vunpack.c.h.b16 %v1004
    %v1671 = vunpack.c.l.b16 %v1005
    %v1672 = vunpack.c.h.b16 %v1005
    %v1673 = vunpack.c.l.b16 %v1006
    %v1674 = vunpack.c.h.b16 %v1006
    %v1675 = vunpack.c.l.b16 %v1007
    %v1676 = vunpack.c.h.b16 %v1007
    %v1677 = vunpack.c.l.b16 %v1008
    %v1678 = vunpack.c.h.b16 %v1008
    %v1679 = vunpack.c.l.b16 %v1009
    %v1680 = vunpack.c.h.b16 %v1009
    %v1681 = vunpack.c.l.b16 %v1010
    %v1682 = vunpack.c.h.b16 %v1010
    %v1683 = vunpack.c.l.b16 %v1011
    %v1684 = vunpack.c.h.b16 %v1011
    %v1685 = vunpack.c.l.b16 %v1012
    %v1686 = vunpack.c.h.b16 %v1012
    %v1687 = vunpack.c.l.b16 %v1013
    %v1688 = vunpack.c.h.b16 %v1013
    %v1689 = vunpack.c.l.b16 %v1014
    %v1690 = vunpack.c.h.b16 %v1014
    %v1691 = vunpack.c.l.b16 %v1015
    %v1692 = vunpack.c.h.b16 %v1015
    %v1693 = vunpack.c.l.b16 %v1016
    %v1694 = vunpack.c.h.b16 %v1016
    %v1695 = vunpack.c.l.b16 %v1017
    %v1696 = vunpack.c.h.b16 %v1017
    %v1697 = vunpack.c.l.b16 %v1018
    %v1698 = vunpack.c.h.b16 %v1018
    %v1699 = vunpack.c.l.b16 %v1019
    %v1700 = vunpack.c.h.b16 %v1019
    %v1701 = vunpack.c.l.b16 %v1020
    %v1702 = vunpack.c.h.b16 %v1020
    %v1703 = vunpack.c.l.b16 %v1021
    %v1704 = vunpack.c.h.b16 %v1021
    %v1705 = vunpack.c.l.b16 %v1022
    %v1706 = vunpack.c.h.b16 %v1022
    %v1707 = vunpack.c.l.b16 %v1023
    %v1708 = vunpack.c.h.b16 %v1023
    %v1709 = vunpack.c.l.b16 %v1024
    %v1710 = vunpack.c.h.b16 %v1024
    %v1711 = vunpack.c.l.b16 %v1025
    %v1712 = vunpack.c.h.b16 %v1025
    %v1713 = vunpack.c.l.b16 %v1026
    %v1714 = vunpack.c.h.b16 %v1026
    %v1715 = vunpack.c.l.b16 %v1027
    %v1716 = vunpack.c.h.b16 %v1027
    %v1717 = vunpack.c.l.b16 %v1028
    %v1718 = vunpack.c.h.b16 %v1028
    %v1719 = vunpack.c.l.b16 %v1029
    %v1720 = vunpack.c.h.b16 %v1029
    %v1721 = vunpack.c.l.b16 %v1030
    %v1722 = vunpack.c.h.b16 %v1030
    %v1723 = vunpack.c.l.b16 %v1031
    %v1724 = vunpack.c.h.b16 %v1031
    %v1725 = vunpack.c.l.b16 %v1032
    %v1726 = vunpack.c.h.b16 %v1032
    %v1727 = vunpack.c.l.b16 %v1033
    %v1728 = vunpack.c.h.b16 %v1033
    %v1729 = vunpack.c.l.b16 %v1034
    %v1730 = vunpack.c.h.b16 %v1034
    %v1731 = vunpack.c.l.b16 %v1035
    %v1732 = vunpack.c.h.b16 %v1035
    %v1733 = vunpack.c.l.b16 %v1036
    %v1734 = vunpack.c.h.b16 %v1036
    %v1735 = vunpack.c.l.b16 %v1037
    %v1736 = vunpack.c.h.b16 %v1037
    %v1737 = vunpack.c.l.b16 %v1038
    %v1738 = vunpack.c.h.b16 %v1038
    %v1739 = vunpack.c.l.b16 %v1039
    %v1740 = vunpack.c.h.b16 %v1039
    %v1741 = vunpack.c.l.b16 %v1040
    %v1742 = vunpack.c.h.b16 %v1040
    %v1743 = vunpack.c.l.b16 %v1041
    %v1744 = vunpack.c.h.b16 %v1041
    %v1745 = vunpack.c.l.b16 %v1042
    %v1746 = vunpack.c.h.b16 %v1042
    %v1747 = vunpack.c.l.b16 %v1043
    %v1748 = vunpack.c.h.b16 %v1043
    %v1749 = vunpack.c.l.b16 %v1044
    %v1750 = vunpack.c.h.b16 %v1044
    %v1751 = vunpack.c.l.b16 %v1045
    %v1752 = vunpack.c.h.b16 %v1045
    %v1753 = vunpack.c.l.b16 %v1046
    %v1754 = vunpack.c.h.b16 %v1046
    %v1755 = vunpack.c.l.b16 %v1047
    %v1756 = vunpack.c.h.b16 %v1047
    %v1757 = vunpack.c.l.b16 %v1048
    %v1758 = vunpack.c.h.b16 %v1048
    %v1759 = vunpack.c.l.b16 %v1049
    %v1760 = vunpack.c.h.b16 %v1049
    %v1761 = vunpack.c.l.b16 %v1050
    %v1762 = vunpack.c.h.b16 %v1050
    %v1763 = vunpack.c.l.b16 %v1051
    %v1764 = vunpack.c.h.b16 %v1051
    %v1765 = vunpack.c.l.b16 %v1052
    %v1766 = vunpack.c.h.b16 %v1052
    %v1767 = vunpack.c.l.b16 %v1053
    %v1768 = vunpack.c.h.b16 %v1053
    %v1769 = vunpack.c.l.b16 %v1054
    %v1770 = vunpack.c.h.b16 %v1054
    %v1771 = vunpack.c.l.b16 %v1055
    %v1772 = vunpack.c.h.b16 %v1055
    %v1773 = vunpack.c.l.b16 %v1056
    %v1774 = vunpack.c.h.b16 %v1056
    %v1775 = vunpack.c.l.b16 %v1057
    %v1776 = vunpack.c.h.b16 %v1057
    %v1777 = vunpack.c.l.b16 %v1058
    %v1778 = vunpack.c.h.b16 %v1058
    %v1779 = vunpack.c.l.b16 %v1059
    %v1780 = vunpack.c.h.b16 %v1059
    %v1781 = vunpack.c.l.b16 %v1060
    %v1782 = vunpack.c.h.b16 %v1060
    %v1783 = vunpack.c.l.b16 %v1061
    %v1784 = vunpack.c.h.b16 %v1061
    %v1785 = vunpack.c.l.b16 %v1062
    %v1786 = vunpack.c.h.b16 %v1062
    %v1787 = vunpack.c.l.b16 %v1063
    %v1788 = vunpack.c.h.b16 %v1063
    %v1789 = vunpack.c.l.b16 %v1064
    %v1790 = vunpack.c.h.b16 %v1064
    %v1791 = vunpack.c.l.b16 %v1065
    %v1792 = vunpack.c.h.b16 %v1065
    %v1793 = vunpack.c.l.b16 %v1066
    %v1794 = vunpack.c.h.b16 %v1066
    %v1795 = vunpack.c.l.b16 %v1067
    %v1796 = vunpack.c.h.b16 %v1067
    %v1797 = vunpack.c.l.b16 %v1068
    %v1798 = vunpack.c.h.b16 %v1068
    %v1799 = vunpack.c.l.b16 %v1069
    %v1800 = vunpack.c.h.b16 %v1069
    %v1801 = vunpack.c.l.b16 %v1070
    %v1802 = vunpack.c.h.b16 %v1070
    %v1803 = vunpack.c.l.b16 %v1071
    %v1804 = vunpack.c.h.b16 %v1071
    %v1805 = vunpack.c.l.b16 %v1072
    %v1806 = vunpack.c.h.b16 %v1072
    %v1807 = vunpack.c.l.b16 %v1073
    %v1808 = vunpack.c.h.b16 %v1073
    %v1809 = vunpack.c.l.b16 %v1074
    %v1810 = vunpack.c.h.b16 %v1074
    %v1811 = vunpack.c.l.b16 %v1075
    %v1812 = vunpack.c.h.b16 %v1075
    %v1813 = vunpack.c.l.b16 %v1076
    %v1814 = vunpack.c.h.b16 %v1076
    %v1815 = vunpack.c.l.b16 %v1077
    %v1816 = vunpack.c.h.b16 %v1077
    %v1817 = vunpack.c.l.b16 %v1078
    %v1818 = vunpack.c.h.b16 %v1078
    %v1819 = vunpack.c.l.b16 %v1079
    %v1820 = vunpack.c.h.b16 %v1079
    %v1821 = vunpack.c.l.b16 %v1080
    %v1822 = vunpack.c.h.b16 %v1080
    %v1823 = vunpack.c.l.b16 %v1081
    %v1824 = vunpack.c.h.b16 %v1081
    %v1825 = vunpack.c.l.b16 %v1082
    %v1826 = vunpack.c.h.b16 %v1082
    %v1827 = vunpack.c.l.b16 %v1083
    %v1828 = vunpack.c.h.b16 %v1083
    %v1829 = vunpack.c.l.b16 %v1084
    %v1830 = vunpack.c.h.b16 %v1084
    %v1831 = vunpack.c.l.b16 %v1085
    %v1832 = vunpack.c.h.b16 %v1085
    %v1833 = vunpack.c.l.b16 %v1086
    %v1834 = vunpack.c.h.b16 %v1086
    %v1835 = vunpack.c.l.b16 %v1087
    %v1836 = vunpack.c.h.b16 %v1087
    %v1837 = vunpack.c.l.b16 %v1088
    %v1838 = vunpack.c.h.b16 %v1088
    %v1839 = vunpack.c.l.b16 %v1089
    %v1840 = vunpack.c.h.b16 %v1089
    %v1841 = vunpack.c.l.b16 %v1090
    %v1842 = vunpack.c.h.b16 %v1090
    %v1843 = vunpack.c.l.b16 %v1091
    %v1844 = vunpack.c.h.b16 %v1091
    %v1845 = vunpack.c.l.b16 %v1092
    %v1846 = vunpack.c.h.b16 %v1092
    %v1847 = vunpack.c.l.b16 %v1093
    %v1848 = vunpack.c.h.b16 %v1093
    %v1849 = vunpack.c.l.b16 %v1094
    %v1850 = vunpack.c.h.b16 %v1094
    %v1851 = vunpack.c.l.b16 %v1095
    %v1852 = vunpack.c.h.b16 %v1095
    %v1853 = vunpack.c.l.b16 %v1096
    %v1854 = vunpack.c.h.b16 %v1096
    %v1855 = vunpack.c.l.b16 %v1097
    %v1856 = vunpack.c.h.b16 %v1097
    %v1857 = vunpack.c.l.b16 %v1098
    %v1858 = vunpack.c.h.b16 %v1098
    %v1859 = vunpack.c.l.b16 %v1099
    %v1860 = vunpack.c.h.b16 %v1099
    %v1861 = vunpack.c.l.b16 %v1100
    %v1862 = vunpack.c.h.b16 %v1100
    %v1863 = vunpack.c.l.b16 %v1101
    %v1864 = vunpack.c.h.b16 %v1101
    %v1865 = vunpack.c.l.b16 %v1102
    %v1866 = vunpack.c.h.b16 %v1102
    %v1867 = vunpack.c.l.b16 %v1103
    %v1868 = vunpack.c.h.b16 %v1103
    %v1869 = vunpack.c.l.b16 %v1104
    %v1870 = vunpack.c.h.b16 %v1104
    %v1871 = vunpack.c.l.b16 %v1105
    %v1872 = vunpack.c.h.b16 %v1105
    %v1873 = vunpack.c.l.b16 %v1106
    %v1874 = vunpack.c.h.b16 %v1106
    %v1875 = vunpack.c.l.b16 %v1107
    %v1876 = vunpack.c.h.b16 %v1107
    %v1877 = vunpack.c.l.b16 %v1108
    %v1878 = vunpack.c.h.b16 %v1108
    %v1879 = vunpack.c.l.b16 %v1109
    %v1880 = vunpack.c.h.b16 %v1109
    %v1881 = vunpack.c.l.b16 %v1110
    %v1882 = vunpack.c.h.b16 %v1110
    %v1883 = vunpack.c.l.b16 %v1111
    %v1884 = vunpack.c.h.b16 %v1111
    %v1885 = vunpack.c.l.b16 %v1112
    %v1886 = vunpack.c.h.b16 %v1112
    %v1887 = vunpack.c.l.b16 %v1113
    %v1888 = vunpack.c.h.b16 %v1113
    %v1889 = vunpack.c.l.b16 %v1114
    %v1890 = vunpack.c.h.b16 %v1114
    %v1891 = vunpack.c.l.b16 %v1115
    %v1892 = vunpack.c.h.b16 %v1115
    %v1893 = vunpack.c.l.b16 %v1116
    %v1894 = vunpack.c.h.b16 %v1116
    %v1895 = vunpack.c.l.b16 %v1117
    %v1896 = vunpack.c.h.b16 %v1117
    %v1897 = vunpack.c.l.b16 %v1118
    %v1898 = vunpack.c.h.b16 %v1118
    %v1899 = vunpack.c.l.b16 %v1119
    %v1900 = vunpack.c.h.b16 %v1119
    %v1901 = vunpack.c.l.b16 %v1120
    %v1902 = vunpack.c.h.b16 %v1120
    %v1903 = vunpack.c.l.b16 %v1121
    %v1904 = vunpack.c.h.b16 %v1121
    %v1905 = vunpack.c.l.b16 %v1122
    %v1906 = vunpack.c.h.b16 %v1122
    %v1907 = vunpack.c.l.b16 %v1123
    %v1908 = vunpack.c.h.b16 %v1123
    %v1909 = vunpack.c.l.b16 %v1124
    %v1910 = vunpack.c.h.b16 %v1124
    %v1911 = vunpack.c.l.b16 %v1125
    %v1912 = vunpack.c.h.b16 %v1125
    %v1913 = vunpack.c.l.b16 %v1126
    %v1914 = vunpack.c.h.b16 %v1126
    %v1915 = vunpack.c.l.b16 %v1127
    %v1916 = vunpack.c.h.b16 %v1127
    %v1917 = vunpack.c.l.b16 %v1128
    %v1918 = vunpack.c.h.b16 %v1128
    %v1919 = vunpack.c.l.b16 %v1129
    %v1920 = vunpack.c.h.b16 %v1129
    %v1921 = vunpack.c.l.b16 %v1130
    %v1922 = vunpack.c.h.b16 %v1130
    %v1923 = vunpack.c.l.b16 %v1131
    %v1924 = vunpack.c.h.b16 %v1131
    %v1925 = vunpack.c.l.b16 %v1132
    %v1926 = vunpack.c.h.b16 %v1132
    %v1927 = vunpack.c.l.b16 %v1133
    %v1928 = vunpack.c.h.b16 %v1133
    %v1929 = vunpack.c.l.b16 %v1134
    %v1930 = vunpack.c.h.b16 %v1134
    %v1931 = vunpack.c.l.b16 %v1135
    %v1932 = vunpack.c.h.b16 %v1135
    %v1933 = vunpack.c.l.b16 %v1136
    %v1934 = vunpack.c.h.b16 %v1136
    %v1935 = vunpack.c.l.b16 %v1137
    %v1936 = vunpack.c.h.b16 %v1137
    %v1937 = vunpack.c.l.b16 %v1138
    %v1938 = vunpack.c.h.b16 %v1138
    %v1939 = vunpack.c.l.b16 %v1139
    %v1940 = vunpack.c.h.b16 %v1139
    %v1941 = vunpack.c.l.b16 %v1140
    %v1942 = vunpack.c.h.b16 %v1140
    %v1943 = vunpack.c.l.b16 %v1141
    %v1944 = vunpack.c.h.b16 %v1141
    %v1945 = vunpack.c.l.b16 %v1142
    %v1946 = vunpack.c.h.b16 %v1142
    %v1947 = vunpack.c.l.b16 %v1143
    %v1948 = vunpack.c.h.b16 %v1143
    %v1949 = vunpack.c.l.b16 %v1144
    %v1950 = vunpack.c.h.b16 %v1144
    %v1951 = vunpack.c.l.b16 %v1145
    %v1952 = vunpack.c.h.b16 %v1145
    %v1953 = vunpack.c.l.b16 %v1146
    %v1954 = vunpack.c.h.b16 %v1146
    %v1955 = vunpack.c.l.b16 %v1147
    %v1956 = vunpack.c.h.b16 %v1147
    %v1957 = vunpack.c.l.b16 %v1148
    %v1958 = vunpack.c.h.b16 %v1148
    %v1959 = vpack.c.b16 %v1455, %v1447
    %v1960 = vpack.c.b16 %v1456, %v1448
    %v1961 = vpack.c.b16 %v1457, %v1449
    %v1962 = vpack.c.b16 %v1458, %v1450
    %v1963 = vpack.c.b16 %v1459, %v1451
    %v1964 = vpack.c.b16 %v1460, %v1452
    %v1965 = vpack.c.b16 %v1461, %v1453
    %v1966 = vpack.c.b16 %v1462, %v1454
    %v1967 = vpack.c.b16 %v1471, %v1463
    %v1968 = vpack.c.b16 %v1472, %v1464
    %v1969 = vpack.c.b16 %v1473, %v1465
    %v1970 = vpack.c.b16 %v1474, %v1466
    %v1971 = vpack.c.b16 %v1475, %v1467
    %v1972 = vpack.c.b16 %v1476, %v1468
    %v1973 = vpack.c.b16 %v1477, %v1469
    %v1974 = vpack.c.b16 %v1478, %v1470
    %v1975 = vpack.c.b16 %v1487, %v1479
    %v1976 = vpack.c.b16 %v1488, %v1480
    %v1977 = vpack.c.b16 %v1489, %v1481
    %v1978 = vpack.c.b16 %v1490, %v1482
    %v1979 = vpack.c.b16 %v1491, %v1483
    %v1980 = vpack.c.b16 %v1492, %v1484
    %v1981 = vpack.c.b16 %v1493, %v1485
    %v1982 = vpack.c.b16 %v1494, %v1486
    %v1983 = vpack.c.b16 %v1503, %v1495
    %v1984 = vpack.c.b16 %v1504, %v1496
    %v1985 = vpack.c.b16 %v1505, %v1497
    %v1986 = vpack.c.b16 %v1506, %v1498
    %v1987 = vpack.c.b16 %v1507, %v1499
    %v1988 = vpack.c.b16 %v1508, %v1500
    %v1989 = vpack.c.b16 %v1509, %v1501
    %v1990 = vpack.c.b16 %v1510, %v1502
    %v1991 = vpack.c.b16 %v1519, %v1511
    %v1992 = vpack.c.b16 %v1520, %v1512
    %v1993 = vpack.c.b16 %v1521, %v1513
    %v1994 = vpack.c.b16 %v1522, %v1514
    %v1995 = vpack.c.b16 %v1523, %v1515
    %v1996 = vpack.c.b16 %v1524, %v1516
    %v1997 = vpack.c.b16 %v1525, %v1517
    %v1998 = vpack.c.b16 %v1526, %v1518
    %v1999 = vpack.c.b16 %v1535, %v1527
    %v2000 = vpack.c.b16 %v1536, %v1528
    %v2001 = vpack.c.b16 %v1537, %v1529
    %v2002 = vpack.c.b16 %v1538, %v1530
    %v2003 = vpack.c.b16 %v1539, %v1531
    %v2004 = vpack.c.b16 %v1540, %v1532
    %v2005 = vpack.c.b16 %v1541, %v1533
    %v2006 = vpack.c.b16 %v1542, %v1534
    %v2007 = vpack.c.b16 %v1551, %v1543
    %v2008 = vpack.c.b16 %v1552, %v1544
    %v2009 = vpack.c.b16 %v1553, %v1545
    %v2010 = vpack.c.b16 %v1554, %v1546
    %v2011 = vpack.c.b16 %v1555, %v1547
    %v2012 = vpack.c.b16 %v1556, %v1548
    %v2013 = vpack.c.b16 %v1557, %v1549
    %v2014 = vpack.c.b16 %v1558, %v1550
    %v2015 = vpack.c.b16 %v1567, %v1559
    %v2016 = vpack.c.b16 %v1568, %v1560
    %v2017 = vpack.c.b16 %v1569, %v1561
    %v2018 = vpack.c.b16 %v1570, %v1562
    %v2019 = vpack.c.b16 %v1571, %v1563
    %v2020 = vpack.c.b16 %v1572, %v1564
    %v2021 = vpack.c.b16 %v1573, %v1565
    %v2022 = vpack.c.b16 %v1574, %v1566
    %v2023 = vpack.c.b16 %v1583, %v1575
    %v2024 = vpack.c.b16 %v1584, %v1576
    %v2025 = vpack.c.b16 %v1585, %v1577
    %v2026 = vpack.c.b16 %v1586, %v1578
    %v2027 = vpack.c.b16 %v1587, %v1579
    %v2028 = vpack.c.b16 %v1588, %v1580
    %v2029 = vpack.c.b16 %v1589, %v1581
    %v2030 = vpack.c.b16 %v1590, %v1582
    %v2031 = vpack.c.b16 %v1599, %v1591
    %v2032 = vpack.c.b16 %v1600, %v1592
    %v2033 = vpack.c.b16 %v1601, %v1593
    %v2034 = vpack.c.b16 %v1602, %v1594
    %v2035 = vpack.c.b16 %v1603, %v1595
    %v2036 = vpack.c.b16 %v1604, %v1596
    %v2037 = vpack.c.b16 %v1605, %v1597
    %v2038 = vpack.c.b16 %v1606, %v1598
    %v2039 = vpack.c.b16 %v1615, %v1607
    %v2040 = vpack.c.b16 %v1616, %v1608
    %v2041 = vpack.c.b16 %v1617, %v1609
    %v2042 = vpack.c.b16 %v1618, %v1610
    %v2043 = vpack.c.b16 %v1619, %v1611
    %v2044 = vpack.c.b16 %v1620, %v1612
    %v2045 = vpack.c.b16 %v1621, %v1613
    %v2046 = vpack.c.b16 %v1622, %v1614
    %v2047 = vpack.c.b16 %v1631, %v1623
    %v2048 = vpack.c.b16 %v1632, %v1624
    %v2049 = vpack.c.b16 %v1633, %v1625
    %v2050 = vpack.c.b16 %v1634, %v1626
    %v2051 = vpack.c.b16 %v1635, %v1627
    %v2052 = vpack.c.b16 %v1636, %v1628
    %v2053 = vpack.c.b16 %v1637, %v1629
    %v2054 = vpack.c.b16 %v1638, %v1630
    %v2055 = vpack.c.b16 %v1647, %v1639
    %v2056 = vpack.c.b16 %v1648, %v1640
    %v2057 = vpack.c.b16 %v1649, %v1641
    %v2058 = vpack.c.b16 %v1650, %v1642
    %v2059 = vpack.c.b16 %v1651, %v1643
    %v2060 = vpack.c.b16 %v1652, %v1644
    %v2061 = vpack.c.b16 %v1653, %v1645
    %v2062 = vpack.c.b16 %v1654, %v1646
    %v2063 = vpack.c.b16 %v1663, %v1655
    %v2064 = vpack.c.b16 %v1664, %v1656
    %v2065 = vpack.c.b16 %v1665, %v1657
    %v2066 = vpack.c.b16 %v1666, %v1658
    %v2067 = vpack.c.b16 %v1667, %v1659
    %v2068 = vpack.c.b16 %v1668, %v1660
    %v2069 = vpack.c.b16 %v1669, %v1661
    %v2070 = vpack.c.b16 %v1670, %v1662
    %v2071 = vpack.c.b16 %v1679, %v1671
    %v2072 = vpack.c.b16 %v1680, %v1672
    %v2073 = vpack.c.b16 %v1681, %v1673
    %v2074 = vpack.c.b16 %v1682, %v1674
    %v2075 = vpack.c.b16 %v1683, %v1675
    %v2076 = vpack.c.b16 %v1684, %v1676
    %v2077 = vpack.c.b16 %v1685, %v1677
    %v2078 = vpack.c.b16 %v1686, %v1678
    %v2079 = vpack.c.b16 %v1695, %v1687
    %v2080 = vpack.c.b16 %v1696, %v1688
    %v2081 = vpack.c.b16 %v1697, %v1689
    %v2082 = vpack.c.b16 %v1698, %v1690
    %v2083 = vpack.c.b16 %v1699, %v1691
    %v2084 = vpack.c.b16 %v1700, %v1692
    %v2085 = vpack.c.b16 %v1701, %v1693
    %v2086 = vpack.c.b16 %v1702, %v1694
    %v2087 = vpack.c.b16 %v1711, %v1703
    %v2088 = vpack.c.b16 %v1712, %v1704
    %v2089 = vpack.c.b16 %v1713, %v1705
    %v2090 = vpack.c.b16 %v1714, %v1706
    %v2091 = vpack.c.b16 %v1715, %v1707
    %v2092 = vpack.c.b16 %v1716, %v1708
    %v2093 = vpack.c.b16 %v1717, %v1709
    %v2094 = vpack.c.b16 %v1718, %v1710
    %v2095 = vpack.c.b16 %v1727, %v1719
    %v2096 = vpack.c.b16 %v1728, %v1720
    %v2097 = vpack.c.b16 %v1729, %v1721
    %v2098 = vpack.c.b16 %v1730, %v1722
    %v2099 = vpack.c.b16 %v1731, %v1723
    %v2100 = vpack.c.b16 %v1732, %v1724
    %v2101 = vpack.c.b16 %v1733, %v1725
    %v2102 = vpack.c.b16 %v1734, %v1726
    %v2103 = vpack.c.b16 %v1743, %v1735
    %v2104 = vpack.c.b16 %v1744, %v1736
    %v2105 = vpack.c.b16 %v1745, %v1737
    %v2106 = vpack.c.b16 %v1746, %v1738
    %v2107 = vpack.c.b16 %v1747, %v1739
    %v2108 = vpack.c.b16 %v1748, %v1740
    %v2109 = vpack.c.b16 %v1749, %v1741
    %v2110 = vpack.c.b16 %v1750, %v1742
    %v2111 = vpack.c.b16 %v1759, %v1751
    %v2112 = vpack.c.b16 %v1760, %v1752
    %v2113 = vpack.c.b16 %v1761, %v1753
    %v2114 = vpack.c.b16 %v1762, %v1754
    %v2115 = vpack.c.b16 %v1763, %v1755
    %v2116 = vpack.c.b16 %v1764, %v1756
    %v2117 = vpack.c.b16 %v1765, %v1757
    %v2118 = vpack.c.b16 %v1766, %v1758
    %v2119 = vpack.c.b16 %v1775, %v1767
    %v2120 = vpack.c.b16 %v1776, %v1768
    %v2121 = vpack.c.b16 %v1777, %v1769
    %v2122 = vpack.c.b16 %v1778, %v1770
    %v2123 = vpack.c.b16 %v1779, %v1771
    %v2124 = vpack.c.b16 %v1780, %v1772
    %v2125 = vpack.c.b16 %v1781, %v1773
    %v2126 = vpack.c.b16 %v1782, %v1774
    %v2127 = vpack.c.b16 %v1791, %v1783
    %v2128 = vpack.c.b16 %v1792, %v1784
    %v2129 = vpack.c.b16 %v1793, %v1785
    %v2130 = vpack.c.b16 %v1794, %v1786
    %v2131 = vpack.c.b16 %v1795, %v1787
    %v2132 = vpack.c.b16 %v1796, %v1788
    %v2133 = vpack.c.b16 %v1797, %v1789
    %v2134 = vpack.c.b16 %v1798, %v1790
    %v2135 = vpack.c.b16 %v1807, %v1799
    %v2136 = vpack.c.b16 %v1808, %v1800
    %v2137 = vpack.c.b16 %v1809, %v1801
    %v2138 = vpack.c.b16 %v1810, %v1802
    %v2139 = vpack.c.b16 %v1811, %v1803
    %v2140 = vpack.c.b16 %v1812, %v1804
    %v2141 = vpack.c.b16 %v1813, %v1805
    %v2142 = vpack.c.b16 %v1814, %v1806
    %v2143 = vpack.c.b16 %v1823, %v1815
    %v2144 = vpack.c.b16 %v1824, %v1816
    %v2145 = vpack.c.b16 %v1825, %v1817
    %v2146 = vpack.c.b16 %v1826, %v1818
    %v2147 = vpack.c.b16 %v1827, %v1819
    %v2148 = vpack.c.b16 %v1828, %v1820
    %v2149 = vpack.c.b16 %v1829, %v1821
    %v2150 = vpack.c.b16 %v1830, %v1822
    %v2151 = vpack.c.b16 %v1839, %v1831
    %v2152 = vpack.c.b16 %v1840, %v1832
    %v2153 = vpack.c.b16 %v1841, %v1833
    %v2154 = vpack.c.b16 %v1842, %v1834
    %v2155 = vpack.c.b16 %v1843, %v1835
    %v2156 = vpack.c.b16 %v1844, %v1836
    %v2157 = vpack.c.b16 %v1845, %v1837
    %v2158 = vpack.c.b16 %v1846, %v1838
    %v2159 = vpack.c.b16 %v1855, %v1847
    %v2160 = vpack.c.b16 %v1856, %v1848
    %v2161 = vpack.c.b16 %v1857, %v1849
    %v2162 = vpack.c.b16 %v1858, %v1850
    %v2163 = vpack.c.b16 %v1859, %v1851
    %v2164 = vpack.c.b16 %v1860, %v1852
    %v2165 = vpack.c.b16 %v1861, %v1853
    %v2166 = vpack.c.b16 %v1862, %v1854
    %v2167 = vpack.c.b16 %v1871, %v1863
    %v2168 = vpack.c.b16 %v1872, %v1864
    %v2169 = vpack.c.b16 %v1873, %v1865
    %v2170 = vpack.c.b16 %v1874, %v1866
    %v2171 = vpack.c.b16 %v1875, %v1867
    %v2172 = vpack.c.b16 %v1876, %v1868
    %v2173 = vpack.c.b16 %v1877, %v1869
    %v2174 = vpack.c.b16 %v1878, %v1870
    %v2175 = vpack.c.b16 %v1887, %v1879
    %v2176 = vpack.c.b16 %v1888, %v1880
    %v2177 = vpack.c.b16 %v1889, %v1881
    %v2178 = vpack.c.b16 %v1890, %v1882
    %v2179 = vpack.c.b16 %v1891, %v1883
    %v2180 = vpack.c.b16 %v1892, %v1884
    %v2181 = vpack.c.b16 %v1893, %v1885
    %v2182 = vpack.c.b16 %v1894, %v1886
    %v2183 = vpack.c.b16 %v1903, %v1895
    %v2184 = vpack.c.b16 %v1904, %v1896
    %v2185 = vpack.c.b16 %v1905, %v1897
    %v2186 = vpack.c.b16 %v1906, %v1898
    %v2187 = vpack.c.b16 %v1907, %v1899
    %v2188 = vpack.c.b16 %v1908, %v1900
    %v2189 = vpack.c.b16 %v1909, %v1901
    %v2190 = vpack.c.b16 %v1910, %v1902
    %v2191 = vpack.c.b16 %v1919, %v1911
    %v2192 = vpack.c.b16 %v1920, %v1912
    %v2193 = vpack.c.b16 %v1921, %v1913
    %v2194 = vpack.c.b16 %v1922, %v1914
    %v2195 = vpack.c.b16 %v1923, %v1915
    %v2196 = vpack.c.b16 %v1924, %v1916
    %v2197 = vpack.c.b16 %v1925, %v1917
    %v2198 = vpack.c.b16 %v1926, %v1918
    %v2199 = vpack.c.b16 %v1935, %v1927
    %v2200 = vpack.c.b16 %v1936, %v1928
    %v2201 = vpack.c.b16 %v1937, %v1929
    %v2202 = vpack.c.b16 %v1938, %v1930
    %v2203 = vpack.c.b16 %v1939, %v1931
    %v2204 = vpack.c.b16 %v1940, %v1932
    %v2205 = vpack.c.b16 %v1941, %v1933
    %v2206 = vpack.c.b16 %v1942, %v1934
    %v2207 = vpack.c.b16 %v1951, %v1943
    %v2208 = vpack.c.b16 %v1952, %v1944
    %v2209 = vpack.c.b16 %v1953, %v1945
    %v2210 = vpack.c.b16 %v1954, %v1946
    %v2211 = vpack.c.b16 %v1955, %v1947
    %v2212 = vpack.c.b16 %v1956, %v1948
    %v2213 = vpack.c.b16 %v1957, %v1949
    %v2214 = vpack.c.b16 %v1958, %v1950
    %2471 = vmatprep.subr.bf16.mxu0 %v1960
    %2472 = vmatpush1.bf16.msra.mxu0 %v1959
    %2473 = vmatprep.subr.bf16.mxu0 %v1968
    %2474 = vmatpush1.bf16.msra.mxu0 %v1967
    %2475 = vmatprep.subr.bf16.mxu0 %v1976
    %2476 = vmatpush1.bf16.msra.mxu0 %v1975
    %2477 = vmatprep.subr.bf16.mxu0 %v1984
    %2478 = vmatpush1.bf16.msra.mxu0 %v1983
    %2479 = vmatprep.subr.bf16.mxu0 %v1992
    %2480 = vmatpush1.bf16.msra.mxu0 %v1991
    %2481 = vmatprep.subr.bf16.mxu0 %v2000
    %2482 = vmatpush1.bf16.msra.mxu0 %v1999
    %2483 = vmatprep.subr.bf16.mxu0 %v2008
    %2484 = vmatpush1.bf16.msra.mxu0 %v2007
    %2485 = vmatprep.subr.bf16.mxu0 %v2016
    %2486 = vmatpush1.bf16.msra.mxu0 %v2015
    %2487 = vmatprep.subr.bf16.mxu0 %v2024
    %2488 = vmatpush1.bf16.msra.mxu0 %v2023
    %2489 = vmatprep.subr.bf16.mxu0 %v2032
    %2490 = vmatpush1.bf16.msra.mxu0 %v2031
    %2491 = vmatprep.subr.bf16.mxu0 %v2040
    %2492 = vmatpush1.bf16.msra.mxu0 %v2039
    %2493 = vmatprep.subr.bf16.mxu0 %v2048
    %2494 = vmatpush1.bf16.msra.mxu0 %v2047
    %2495 = vmatprep.subr.bf16.mxu0 %v2056
    %2496 = vmatpush1.bf16.msra.mxu0 %v2055
    %2497 = vmatprep.subr.bf16.mxu0 %v2064
    %2498 = vmatpush1.bf16.msra.mxu0 %v2063
    %2499 = vmatprep.subr.bf16.mxu0 %v2072
    %2500 = vmatpush1.bf16.msra.mxu0 %v2071
    %2501 = vmatprep.subr.bf16.mxu0 %v2080
    %2502 = vmatpush1.bf16.msra.mxu0 %v2079
    %2503 = vmatprep.mubr.bf16.mxu0 %v890
    %2504 = vmatmul.mubr.bf16.gmra.mrb[0].mxu0 %v889
    %v2505 = vpop.f32.mrb[0].mxu0
    %v2506 = vadd.f32 %v1154, %v2505
    %v2507 = vpop.f32.mrb[0].mxu0
    %v2508 = vadd.f32 %v1158, %v2507
    %v2509 = vpop.f32.mrb[0].mxu0
    %v2510 = vadd.f32 %v1154, %v2509
    %v2511 = vpop.f32.mrb[0].mxu0
    %v2512 = vadd.f32 %v1158, %v2511
    %2513 = vdwg.mxu0
    %2514 = vmatprep.subr.bf16.mxu0 %v2088
    %2515 = vmatpush1.bf16.msra.mxu0 %v2087
    %2516 = vmatprep.subr.bf16.mxu0 %v2096
    %2517 = vmatpush1.bf16.msra.mxu0 %v2095
    %2518 = vmatprep.subr.bf16.mxu0 %v2104
    %2519 = vmatpush1.bf16.msra.mxu0 %v2103
    %2520 = vmatprep.subr.bf16.mxu0 %v2112
    %2521 = vmatpush1.bf16.msra.mxu0 %v2111
    %2522 = vmatprep.subr.bf16.mxu0 %v2120
    %2523 = vmatpush1.bf16.msra.mxu0 %v2119
    %2524 = vmatprep.subr.bf16.mxu0 %v2128
    %2525 = vmatpush1.bf16.msra.mxu0 %v2127
    %2526 = vmatprep.subr.bf16.mxu0 %v2136
    %2527 = vmatpush1.bf16.msra.mxu0 %v2135
    %2528 = vmatprep.subr.bf16.mxu0 %v2144
    %2529 = vmatpush1.bf16.msra.mxu0 %v2143
    %2530 = vmatprep.subr.bf16.mxu0 %v2152
    %2531 = vmatpush1.bf16.msra.mxu0 %v2151
    %2532 = vmatprep.subr.bf16.mxu0 %v2160
    %2533 = vmatpush1.bf16.msra.mxu0 %v2159
    %2534 = vmatprep.subr.bf16.mxu0 %v2168
    %2535 = vmatpush1.bf16.msra.mxu0 %v2167
    %2536 = vmatprep.subr.bf16.mxu0 %v2176
    %2537 = vmatpush1.bf16.msra.mxu0 %v2175
    %2538 = vmatprep.subr.bf16.mxu0 %v2184
    %2539 = vmatpush1.bf16.msra.mxu0 %v2183
    %2540 = vmatprep.subr.bf16.mxu0 %v2192
    %2541 = vmatpush1.bf16.msra.mxu0 %v2191
    %2542 = vmatprep.subr.bf16.mxu0 %v2200
    %2543 = vmatpush1.bf16.msra.mxu0 %v2199
    %2544 = vmatprep.subr.bf16.mxu0 %v2208
    %2545 = vmatpush1.bf16.msra.mxu0 %v2207
    %2546 = vmatprep.mubr.bf16.mxu0 %v892
    %2547 = vmatmul.mubr.bf16.gmra.mrb[0].mxu0 %v891
    %v2548 = vpop.f32.mrb[0].mxu0
    %v2549 = vadd.f32 %v2506, %v2548
    %v2550 = vpop.f32.mrb[0].mxu0
    %v2551 = vadd.f32 %v2508, %v2550
    %v2552 = vpop.f32.mrb[0].mxu0
    %v2553 = vadd.f32 %v2510, %v2552
    %v2554 = vpop.f32.mrb[0].mxu0
    %v2555 = vadd.f32 %v2512, %v2554
    %2556 = vdwg.mxu0
    %2557 = vmatprep.subr.bf16.mxu0 %v1962
    %2558 = vmatpush1.bf16.msra.mxu0 %v1961
    %2559 = vmatprep.subr.bf16.mxu0 %v1970
    %2560 = vmatpush1.bf16.msra.mxu0 %v1969
    %2561 = vmatprep.subr.bf16.mxu0 %v1978
    %2562 = vmatpush1.bf16.msra.mxu0 %v1977
    %2563 = vmatprep.subr.bf16.mxu0 %v1986
    %2564 = vmatpush1.bf16.msra.mxu0 %v1985
    %2565 = vmatprep.subr.bf16.mxu0 %v1994
    %2566 = vmatpush1.bf16.msra.mxu0 %v1993
    %2567 = vmatprep.subr.bf16.mxu0 %v2002
    %2568 = vmatpush1.bf16.msra.mxu0 %v2001
    %2569 = vmatprep.subr.bf16.mxu0 %v2010
    %2570 = vmatpush1.bf16.msra.mxu0 %v2009
    %2571 = vmatprep.subr.bf16.mxu0 %v2018
    %2572 = vmatpush1.bf16.msra.mxu0 %v2017
    %2573 = vmatprep.subr.bf16.mxu0 %v2026
    %2574 = vmatpush1.bf16.msra.mxu0 %v2025
    %2575 = vmatprep.subr.bf16.mxu0 %v2034
    %2576 = vmatpush1.bf16.msra.mxu0 %v2033
    %2577 = vmatprep.subr.bf16.mxu0 %v2042
    %2578 = vmatpush1.bf16.msra.mxu0 %v2041
    %2579 = vmatprep.subr.bf16.mxu0 %v2050
    %2580 = vmatpush1.bf16.msra.mxu0 %v2049
    %2581 = vmatprep.subr.bf16.mxu0 %v2058
    %2582 = vmatpush1.bf16.msra.mxu0 %v2057
    %2583 = vmatprep.subr.bf16.mxu0 %v2066
    %2584 = vmatpush1.bf16.msra.mxu0 %v2065
    %2585 = vmatprep.subr.bf16.mxu0 %v2074
    %2586 = vmatpush1.bf16.msra.mxu0 %v2073
    %2587 = vmatprep.subr.bf16.mxu0 %v2082
    %2588 = vmatpush1.bf16.msra.mxu0 %v2081
    %2589 = vmatprep.mubr.bf16.mxu0 %v890
    %2590 = vmatmul.mubr.bf16.gmra.mrb[0].mxu0 %v889
    %v2591 = vpop.f32.mrb[0].mxu0
    %v2592 = vadd.f32 %v1162, %v2591
    %v2593 = vpop.f32.mrb[0].mxu0
    %v2594 = vadd.f32 %v1166, %v2593
    %v2595 = vpop.f32.mrb[0].mxu0
    %v2596 = vadd.f32 %v1162, %v2595
    %v2597 = vpop.f32.mrb[0].mxu0
    %v2598 = vadd.f32 %v1166, %v2597
    %2599 = vdwg.mxu0
    %2600 = vmatprep.subr.bf16.mxu0 %v2090
    %2601 = vmatpush1.bf16.msra.mxu0 %v2089
    %2602 = vmatprep.subr.bf16.mxu0 %v2098
    %2603 = vmatpush1.bf16.msra.mxu0 %v2097
    %2604 = vmatprep.subr.bf16.mxu0 %v2106
    %2605 = vmatpush1.bf16.msra.mxu0 %v2105
    %2606 = vmatprep.subr.bf16.mxu0 %v2114
    %2607 = vmatpush1.bf16.msra.mxu0 %v2113
    %2608 = vmatprep.subr.bf16.mxu0 %v2122
    %2609 = vmatpush1.bf16.msra.mxu0 %v2121
    %2610 = vmatprep.subr.bf16.mxu0 %v2130
    %2611 = vmatpush1.bf16.msra.mxu0 %v2129
    %2612 = vmatprep.subr.bf16.mxu0 %v2138
    %2613 = vmatpush1.bf16.msra.mxu0 %v2137
    %2614 = vmatprep.subr.bf16.mxu0 %v2146
    %2615 = vmatpush1.bf16.msra.mxu0 %v2145
    %2616 = vmatprep.subr.bf16.mxu0 %v2154
    %2617 = vmatpush1.bf16.msra.mxu0 %v2153
    %2618 = vmatprep.subr.bf16.mxu0 %v2162
    %2619 = vmatpush1.bf16.msra.mxu0 %v2161
    %2620 = vmatprep.subr.bf16.mxu0 %v2170
    %2621 = vmatpush1.bf16.msra.mxu0 %v2169
    %2622 = vmatprep.subr.bf16.mxu0 %v2178
    %2623 = vmatpush1.bf16.msra.mxu0 %v2177
    %2624 = vmatprep.subr.bf16.mxu0 %v2186
    %2625 = vmatpush1.bf16.msra.mxu0 %v2185
    %2626 = vmatprep.subr.bf16.mxu0 %v2194
    %2627 = vmatpush1.bf16.msra.mxu0 %v2193
    %2628 = vmatprep.subr.bf16.mxu0 %v2202
    %2629 = vmatpush1.bf16.msra.mxu0 %v2201
    %2630 = vmatprep.subr.bf16.mxu0 %v2210
    %2631 = vmatpush1.bf16.msra.mxu0 %v2209
    %2632 = vmatprep.mubr.bf16.mxu0 %v892
    %2633 = vmatmul.mubr.bf16.gmra.mrb[0].mxu0 %v891
    %v2634 = vpop.f32.mrb[0].mxu0
    %v2635 = vadd.f32 %v2592, %v2634
    %v2636 = vpop.f32.mrb[0].mxu0
    %v2637 = vadd.f32 %v2594, %v2636
    %v2638 = vpop.f32.mrb[0].mxu0
    %v2639 = vadd.f32 %v2596, %v2638
    %v2640 = vpop.f32.mrb[0].mxu0
    %v2641 = vadd.f32 %v2598, %v2640
    %2642 = vdwg.mxu0
    %2643 = vmatprep.subr.bf16.mxu0 %v1964
    %2644 = vmatpush1.bf16.msra.mxu0 %v1963
    %2645 = vmatprep.subr.bf16.mxu0 %v1972
    %2646 = vmatpush1.bf16.msra.mxu0 %v1971
    %2647 = vmatprep.subr.bf16.mxu0 %v1980
    %2648 = vmatpush1.bf16.msra.mxu0 %v1979
    %2649 = vmatprep.subr.bf16.mxu0 %v1988
    %2650 = vmatpush1.bf16.msra.mxu0 %v1987
    %2651 = vmatprep.subr.bf16.mxu0 %v1996
    %2652 = vmatpush1.bf16.msra.mxu0 %v1995
    %2653 = vmatprep.subr.bf16.mxu0 %v2004
    %2654 = vmatpush1.bf16.msra.mxu0 %v2003
    %2655 = vmatprep.subr.bf16.mxu0 %v2012
    %2656 = vmatpush1.bf16.msra.mxu0 %v2011
    %2657 = vmatprep.subr.bf16.mxu0 %v2020
    %2658 = vmatpush1.bf16.msra.mxu0 %v2019
    %2659 = vmatprep.subr.bf16.mxu0 %v2028
    %2660 = vmatpush1.bf16.msra.mxu0 %v2027
    %2661 = vmatprep.subr.bf16.mxu0 %v2036
    %2662 = vmatpush1.bf16.msra.mxu0 %v2035
    %2663 = vmatprep.subr.bf16.mxu0 %v2044
    %2664 = vmatpush1.bf16.msra.mxu0 %v2043
    %2665 = vmatprep.subr.bf16.mxu0 %v2052
    %2666 = vmatpush1.bf16.msra.mxu0 %v2051
    %2667 = vmatprep.subr.bf16.mxu0 %v2060
    %2668 = vmatpush1.bf16.msra.mxu0 %v2059
    %2669 = vmatprep.subr.bf16.mxu0 %v2068
    %2670 = vmatpush1.bf16.msra.mxu0 %v2067
    %2671 = vmatprep.subr.bf16.mxu0 %v2076
    %2672 = vmatpush1.bf16.msra.mxu0 %v2075
    %2673 = vmatprep.subr.bf16.mxu0 %v2084
    %2674 = vmatpush1.bf16.msra.mxu0 %v2083
    %2675 = vmatprep.mubr.bf16.mxu0 %v890
    %2676 = vmatmul.mubr.bf16.gmra.mrb[0].mxu0 %v889
    %v2677 = vpop.f32.mrb[0].mxu0
    %v2678 = vadd.f32 %v1170, %v2677
    %v2679 = vpop.f32.mrb[0].mxu0
    %v2680 = vadd.f32 %v1174, %v2679
    %v2681 = vpop.f32.mrb[0].mxu0
    %v2682 = vadd.f32 %v1170, %v2681
    %v2683 = vpop.f32.mrb[0].mxu0
    %v2684 = vadd.f32 %v1174, %v2683
    %2685 = vdwg.mxu0
    %2686 = vmatprep.subr.bf16.mxu0 %v2092
    %2687 = vmatpush1.bf16.msra.mxu0 %v2091
    %2688 = vmatprep.subr.bf16.mxu0 %v2100
    %2689 = vmatpush1.bf16.msra.mxu0 %v2099
    %2690 = vmatprep.subr.bf16.mxu0 %v2108
    %2691 = vmatpush1.bf16.msra.mxu0 %v2107
    %2692 = vmatprep.subr.bf16.mxu0 %v2116
    %2693 = vmatpush1.bf16.msra.mxu0 %v2115
    %2694 = vmatprep.subr.bf16.mxu0 %v2124
    %2695 = vmatpush1.bf16.msra.mxu0 %v2123
    %2696 = vmatprep.subr.bf16.mxu0 %v2132
    %2697 = vmatpush1.bf16.msra.mxu0 %v2131
    %2698 = vmatprep.subr.bf16.mxu0 %v2140
    %2699 = vmatpush1.bf16.msra.mxu0 %v2139
    %2700 = vmatprep.subr.bf16.mxu0 %v2148
    %2701 = vmatpush1.bf16.msra.mxu0 %v2147
    %2702 = vmatprep.subr.bf16.mxu0 %v2156
    %2703 = vmatpush1.bf16.msra.mxu0 %v2155
    %2704 = vmatprep.subr.bf16.mxu0 %v2164
    %2705 = vmatpush1.bf16.msra.mxu0 %v2163
    %2706 = vmatprep.subr.bf16.mxu0 %v2172
    %2707 = vmatpush1.bf16.msra.mxu0 %v2171
    %2708 = vmatprep.subr.bf16.mxu0 %v2180
    %2709 = vmatpush1.bf16.msra.mxu0 %v2179
    %2710 = vmatprep.subr.bf16.mxu0 %v2188
    %2711 = vmatpush1.bf16.msra.mxu0 %v2187
    %2712 = vmatprep.subr.bf16.mxu0 %v2196
    %2713 = vmatpush1.bf16.msra.mxu0 %v2195
    %2714 = vmatprep.subr.bf16.mxu0 %v2204
    %2715 = vmatpush1.bf16.msra.mxu0 %v2203
    %2716 = vmatprep.subr.bf16.mxu0 %v2212
    %2717 = vmatpush1.bf16.msra.mxu0 %v2211
    %2718 = vmatprep.mubr.bf16.mxu0 %v892
    %2719 = vmatmul.mubr.bf16.gmra.mrb[0].mxu0 %v891
    %v2720 = vpop.f32.mrb[0].mxu0
    %v2721 = vadd.f32 %v2678, %v2720
    %v2722 = vpop.f32.mrb[0].mxu0
    %v2723 = vadd.f32 %v2680, %v2722
    %v2724 = vpop.f32.mrb[0].mxu0
    %v2725 = vadd.f32 %v2682, %v2724
    %v2726 = vpop.f32.mrb[0].mxu0
    %v2727 = vadd.f32 %v2684, %v2726
    %2728 = vdwg.mxu0
    %2729 = vmatprep.subr.bf16.mxu0 %v1966
    %2730 = vmatpush1.bf16.msra.mxu0 %v1965
    %2731 = vmatprep.subr.bf16.mxu0 %v1974
    %2732 = vmatpush1.bf16.msra.mxu0 %v1973
    %2733 = vmatprep.subr.bf16.mxu0 %v1982
    %2734 = vmatpush1.bf16.msra.mxu0 %v1981
    %2735 = vmatprep.subr.bf16.mxu0 %v1990
    %2736 = vmatpush1.bf16.msra.mxu0 %v1989
    %2737 = vmatprep.subr.bf16.mxu0 %v1998
    %2738 = vmatpush1.bf16.msra.mxu0 %v1997
    %2739 = vmatprep.subr.bf16.mxu0 %v2006
    %2740 = vmatpush1.bf16.msra.mxu0 %v2005
    %2741 = vmatprep.subr.bf16.mxu0 %v2014
    %2742 = vmatpush1.bf16.msra.mxu0 %v2013
    %2743 = vmatprep.subr.bf16.mxu0 %v2022
    %2744 = vmatpush1.bf16.msra.mxu0 %v2021
    %2745 = vmatprep.subr.bf16.mxu0 %v2030
    %2746 = vmatpush1.bf16.msra.mxu0 %v2029
    %2747 = vmatprep.subr.bf16.mxu0 %v2038
    %2748 = vmatpush1.bf16.msra.mxu0 %v2037
    %2749 = vmatprep.subr.bf16.mxu0 %v2046
    %2750 = vmatpush1.bf16.msra.mxu0 %v2045
    %2751 = vmatprep.subr.bf16.mxu0 %v2054
    %2752 = vmatpush1.bf16.msra.mxu0 %v2053
    %2753 = vmatprep.subr.bf16.mxu0 %v2062
    %2754 = vmatpush1.bf16.msra.mxu0 %v2061
    %2755 = vmatprep.subr.bf16.mxu0 %v2070
    %2756 = vmatpush1.bf16.msra.mxu0 %v2069
    %2757 = vmatprep.subr.bf16.mxu0 %v2078
    %2758 = vmatpush1.bf16.msra.mxu0 %v2077
    %2759 = vmatprep.subr.bf16.mxu0 %v2086
    %2760 = vmatpush1.bf16.msra.mxu0 %v2085
    %2761 = vmatprep.mubr.bf16.mxu0 %v890
    %2762 = vmatmul.mubr.bf16.gmra.mrb[0].mxu0 %v889
    %v2763 = vpop.f32.mrb[0].mxu0
    %v2764 = vadd.f32 %v1178, %v2763
    %v2765 = vpop.f32.mrb[0].mxu0
    %v2766 = vadd.f32 %v1182, %v2765
    %v2767 = vpop.f32.mrb[0].mxu0
    %v2768 = vadd.f32 %v1178, %v2767
    %v2769 = vpop.f32.mrb[0].mxu0
    %v2770 = vadd.f32 %v1182, %v2769
    %2771 = vdwg.mxu0
    %2772 = vmatprep.subr.bf16.mxu0 %v2094
    %2773 = vmatpush1.bf16.msra.mxu0 %v2093
    %2774 = vmatprep.subr.bf16.mxu0 %v2102
    %2775 = vmatpush1.bf16.msra.mxu0 %v2101
    %2776 = vmatprep.subr.bf16.mxu0 %v2110
    %2777 = vmatpush1.bf16.msra.mxu0 %v2109
    %2778 = vmatprep.subr.bf16.mxu0 %v2118
    %2779 = vmatpush1.bf16.msra.mxu0 %v2117
    %2780 = vmatprep.subr.bf16.mxu0 %v2126
    %2781 = vmatpush1.bf16.msra.mxu0 %v2125
    %2782 = vmatprep.subr.bf16.mxu0 %v2134
    %2783 = vmatpush1.bf16.msra.mxu0 %v2133
    %2784 = vmatprep.subr.bf16.mxu0 %v2142
    %2785 = vmatpush1.bf16.msra.mxu0 %v2141
    %2786 = vmatprep.subr.bf16.mxu0 %v2150
    %2787 = vmatpush1.bf16.msra.mxu0 %v2149
    %2788 = vmatprep.subr.bf16.mxu0 %v2158
    %2789 = vmatpush1.bf16.msra.mxu0 %v2157
    %2790 = vmatprep.subr.bf16.mxu0 %v2166
    %2791 = vmatpush1.bf16.msra.mxu0 %v2165
    %2792 = vmatprep.subr.bf16.mxu0 %v2174
    %2793 = vmatpush1.bf16.msra.mxu0 %v2173
    %2794 = vmatprep.subr.bf16.mxu0 %v2182
    %2795 = vmatpush1.bf16.msra.mxu0 %v2181
    %2796 = vmatprep.subr.bf16.mxu0 %v2190
    %2797 = vmatpush1.bf16.msra.mxu0 %v2189
    %2798 = vmatprep.subr.bf16.mxu0 %v2198
    %2799 = vmatpush1.bf16.msra.mxu0 %v2197
    %2800 = vmatprep.subr.bf16.mxu0 %v2206
    %2801 = vmatpush1.bf16.msra.mxu0 %v2205
    %2802 = vmatprep.subr.bf16.mxu0 %v2214
    %2803 = vmatpush1.bf16.msra.mxu0 %v2213
    %2804 = vmatprep.mubr.bf16.mxu0 %v892
    %2805 = vmatmul.mubr.bf16.gmra.mrb[0].mxu0 %v891
    %v2806 = vpop.f32.mrb[0].mxu0
    %v2807 = vadd.f32 %v2764, %v2806
    %v2808 = vpop.f32.mrb[0].mxu0
    %v2809 = vadd.f32 %v2766, %v2808
    %v2810 = vpop.f32.mrb[0].mxu0
    %v2811 = vadd.f32 %v2768, %v2810
    %v2812 = vpop.f32.mrb[0].mxu0
    %v2813 = vadd.f32 %v2770, %v2812
    %2814 = vdwg.mxu0
    %v2815 = vmax.f32 %v2549, 0.0
    %v2816 = vmax.f32 %v2551, 0.0
    %v2817 = vmax.f32 %v2635, 0.0
    %v2818 = vmax.f32 %v2637, 0.0
    %v2819 = vmax.f32 %v2721, 0.0
    %v2820 = vmax.f32 %v2723, 0.0
    %v2821 = vmax.f32 %v2807, 0.0
    %v2822 = vmax.f32 %v2809, 0.0
    %v2823 = vmax.f32 %v2553, 0.0
    %v2824 = vmax.f32 %v2555, 0.0
    %v2825 = vmax.f32 %v2639, 0.0
    %v2826 = vmax.f32 %v2641, 0.0
    %v2827 = vmax.f32 %v2725, 0.0
    %v2828 = vmax.f32 %v2727, 0.0
    %v2829 = vmax.f32 %v2811, 0.0
    %v2830 = vmax.f32 %v2813, 0.0
    %v2831 = vpack.c.bf16 %v2823, %v2815
    %v2832 = vpack.c.bf16 %v2824, %v2816
    %v2833 = vpack.c.bf16 %v2825, %v2817
    %v2834 = vpack.c.bf16 %v2826, %v2818
    %v2835 = vpack.c.bf16 %v2827, %v2819
    %v2836 = vpack.c.bf16 %v2828, %v2820
    %v2837 = vpack.c.bf16 %v2829, %v2821
    %v2838 = vpack.c.bf16 %v2830, %v2822
    %2839 = vst [vmem:[#allocation3] sm:$0xff] %v2831
    %2840 = vst [vmem:[#allocation3 + $0x8] sm:$0xff] %v2832
    %2841 = vst [vmem:[#allocation3 + $0x10] sm:$0xff] %v2833
    %2842 = vst [vmem:[#allocation3 + $0x18] sm:$0xff] %v2834
    %2843 = vst [vmem:[#allocation3 + $0x20] sm:$0xff] %v2835
    %2844 = vst [vmem:[#allocation3 + $0x28] sm:$0xff] %v2836
    %2845 = vst [vmem:[#allocation3 + $0x30] sm:$0xff] %v2837
    %2846 = vst [vmem:[#allocation3 + $0x38] sm:$0xff] %v2838
    %v2847 = vld [vmem:[#allocation3] sm:$0xff]
    %v2848 = vld [vmem:[#allocation3 + $0x8] sm:$0xff]
    %v2849 = vld [vmem:[#allocation3 + $0x10] sm:$0xff]
    %v2850 = vld [vmem:[#allocation3 + $0x18] sm:$0xff]
    %v2851 = vld [vmem:[#allocation3 + $0x20] sm:$0xff]
    %v2852 = vld [vmem:[#allocation3 + $0x28] sm:$0xff]
    %v2853 = vld [vmem:[#allocation3 + $0x30] sm:$0xff]
    %v2854 = vld [vmem:[#allocation3 + $0x38] sm:$0xff]
    %v2855 = vld [vmem:[#allocation10] sm:$0xf]
    %v2856 = vld [vmem:[#allocation10 + $0x4] sm:$0xf]
    %v2857 = vld [vmem:[#allocation10 + $0x8] sm:$0xf]
    %v2858 = vld [vmem:[#allocation10 + $0xc] sm:$0xf]
    %v2859 = vld [vmem:[#allocation10 + $0x10] sm:$0xf]
    %v2860 = vld [vmem:[#allocation10 + $0x14] sm:$0xf]
    %v2861 = vld [vmem:[#allocation10 + $0x18] sm:$0xf]
    %v2862 = vld [vmem:[#allocation10 + $0x1c] sm:$0xf]
    %v2863 = vld [vmem:[#allocation10 + $0x20] sm:$0xf]
    %v2864 = vld [vmem:[#allocation10 + $0x24] sm:$0xf]
    %v2865 = vld [vmem:[#allocation10 + $0x28] sm:$0xf]
    %v2866 = vld [vmem:[#allocation10 + $0x2c] sm:$0xf]
    %v2867 = vld [vmem:[#allocation10 + $0x30] sm:$0xf]
    %v2868 = vld [vmem:[#allocation10 + $0x34] sm:$0xf]
    %v2869 = vld [vmem:[#allocation10 + $0x38] sm:$0xf]
    %v2870 = vld [vmem:[#allocation10 + $0x3c] sm:$0xf]
    %v2871 = vld [vmem:[#allocation10 + $0x40] sm:$0xf]
    %v2872 = vld [vmem:[#allocation10 + $0x44] sm:$0xf]
    %v2873 = vld [vmem:[#allocation10 + $0x48] sm:$0xf]
    %v2874 = vld [vmem:[#allocation10 + $0x4c] sm:$0xf]
    %v2875 = vld [vmem:[#allocation10 + $0x50] sm:$0xf]
    %v2876 = vld [vmem:[#allocation10 + $0x54] sm:$0xf]
    %v2877 = vld [vmem:[#allocation10 + $0x58] sm:$0xf]
    %v2878 = vld [vmem:[#allocation10 + $0x5c] sm:$0xf]
    %v2879 = vld [vmem:[#allocation10 + $0x60] sm:$0xf]
    %v2880 = vld [vmem:[#allocation10 + $0x64] sm:$0xf]
    %v2881 = vld [vmem:[#allocation10 + $0x68] sm:$0xf]
    %v2882 = vld [vmem:[#allocation10 + $0x6c] sm:$0xf]
    %v2883 = vld [vmem:[#allocation10 + $0x70] sm:$0xf]
    %v2884 = vld [vmem:[#allocation10 + $0x74] sm:$0xf]
    %v2885 = vld [vmem:[#allocation10 + $0x78] sm:$0xf]
    %v2886 = vld [vmem:[#allocation10 + $0x7c] sm:$0xf]
    %v2887 = vld [vmem:[#allocation10 + $0x80] sm:$0xf]
    %v2888 = vld [vmem:[#allocation10 + $0x84] sm:$0xf]
    %v2889 = vld [vmem:[#allocation10 + $0x88] sm:$0xf]
    %v2890 = vld [vmem:[#allocation10 + $0x8c] sm:$0xf]
    %v2891 = vld [vmem:[#allocation10 + $0x90] sm:$0xf]
    %v2892 = vld [vmem:[#allocation10 + $0x94] sm:$0xf]
    %v2893 = vld [vmem:[#allocation10 + $0x98] sm:$0xf]
    %v2894 = vld [vmem:[#allocation10 + $0x9c] sm:$0xf]
    %v2895 = vld [vmem:[#allocation10 + $0xa0] sm:$0xf]
    %v2896 = vld [vmem:[#allocation10 + $0xa4] sm:$0xf]
    %v2897 = vld [vmem:[#allocation10 + $0xa8] sm:$0xf]
    %v2898 = vld [vmem:[#allocation10 + $0xac] sm:$0xf]
    %v2899 = vld [vmem:[#allocation10 + $0xb0] sm:$0xf]
    %v2900 = vld [vmem:[#allocation10 + $0xb4] sm:$0xf]
    %v2901 = vld [vmem:[#allocation10 + $0xb8] sm:$0xf]
    %v2902 = vld [vmem:[#allocation10 + $0xbc] sm:$0xf]
    %v2903 = vld [vmem:[#allocation10 + $0xc0] sm:$0xf]
    %v2904 = vld [vmem:[#allocation10 + $0xc4] sm:$0xf]
    %v2905 = vld [vmem:[#allocation10 + $0xc8] sm:$0xf]
    %v2906 = vld [vmem:[#allocation10 + $0xcc] sm:$0xf]
    %v2907 = vld [vmem:[#allocation10 + $0xd0] sm:$0xf]
    %v2908 = vld [vmem:[#allocation10 + $0xd4] sm:$0xf]
    %v2909 = vld [vmem:[#allocation10 + $0xd8] sm:$0xf]
    %v2910 = vld [vmem:[#allocation10 + $0xdc] sm:$0xf]
    %v2911 = vld [vmem:[#allocation10 + $0xe0] sm:$0xf]
    %v2912 = vld [vmem:[#allocation10 + $0xe4] sm:$0xf]
    %v2913 = vld [vmem:[#allocation10 + $0xe8] sm:$0xf]
    %v2914 = vld [vmem:[#allocation10 + $0xec] sm:$0xf]
    %v2915 = vld [vmem:[#allocation10 + $0xf0] sm:$0xf]
    %v2916 = vld [vmem:[#allocation10 + $0xf4] sm:$0xf]
    %v2917 = vld [vmem:[#allocation10 + $0xf8] sm:$0xf]
    %v2918 = vld [vmem:[#allocation10 + $0xfc] sm:$0xf]
    %v2919 = vld [vmem:[#allocation10 + $0x100] sm:$0xf]
    %v2920 = vld [vmem:[#allocation10 + $0x104] sm:$0xf]
    %v2921 = vld [vmem:[#allocation10 + $0x108] sm:$0xf]
    %v2922 = vld [vmem:[#allocation10 + $0x10c] sm:$0xf]
    %v2923 = vld [vmem:[#allocation10 + $0x110] sm:$0xf]
    %v2924 = vld [vmem:[#allocation10 + $0x114] sm:$0xf]
    %v2925 = vld [vmem:[#allocation10 + $0x118] sm:$0xf]
    %v2926 = vld [vmem:[#allocation10 + $0x11c] sm:$0xf]
    %v2927 = vld [vmem:[#allocation10 + $0x120] sm:$0xf]
    %v2928 = vld [vmem:[#allocation10 + $0x124] sm:$0xf]
    %v2929 = vld [vmem:[#allocation10 + $0x128] sm:$0xf]
    %v2930 = vld [vmem:[#allocation10 + $0x12c] sm:$0xf]
    %v2931 = vld [vmem:[#allocation10 + $0x130] sm:$0xf]
    %v2932 = vld [vmem:[#allocation10 + $0x134] sm:$0xf]
    %v2933 = vld [vmem:[#allocation10 + $0x138] sm:$0xf]
    %v2934 = vld [vmem:[#allocation10 + $0x13c] sm:$0xf]
    %v2935 = vld [vmem:[#allocation10 + $0x140] sm:$0xf]
    %v2936 = vld [vmem:[#allocation10 + $0x144] sm:$0xf]
    %v2937 = vld [vmem:[#allocation10 + $0x148] sm:$0xf]
    %v2938 = vld [vmem:[#allocation10 + $0x14c] sm:$0xf]
    %v2939 = vld [vmem:[#allocation10 + $0x150] sm:$0xf]
    %v2940 = vld [vmem:[#allocation10 + $0x154] sm:$0xf]
    %v2941 = vld [vmem:[#allocation10 + $0x158] sm:$0xf]
    %v2942 = vld [vmem:[#allocation10 + $0x15c] sm:$0xf]
    %v2943 = vld [vmem:[#allocation10 + $0x160] sm:$0xf]
    %v2944 = vld [vmem:[#allocation10 + $0x164] sm:$0xf]
    %v2945 = vld [vmem:[#allocation10 + $0x168] sm:$0xf]
    %v2946 = vld [vmem:[#allocation10 + $0x16c] sm:$0xf]
    %v2947 = vld [vmem:[#allocation10 + $0x170] sm:$0xf]
    %v2948 = vld [vmem:[#allocation10 + $0x174] sm:$0xf]
    %v2949 = vld [vmem:[#allocation10 + $0x178] sm:$0xf]
    %v2950 = vld [vmem:[#allocation10 + $0x17c] sm:$0xf]
    %v2951 = vld [vmem:[#allocation10 + $0x180] sm:$0xf]
    %v2952 = vld [vmem:[#allocation10 + $0x184] sm:$0xf]
    %v2953 = vld [vmem:[#allocation10 + $0x188] sm:$0xf]
    %v2954 = vld [vmem:[#allocation10 + $0x18c] sm:$0xf]
    %v2955 = vld [vmem:[#allocation10 + $0x190] sm:$0xf]
    %v2956 = vld [vmem:[#allocation10 + $0x194] sm:$0xf]
    %v2957 = vld [vmem:[#allocation10 + $0x198] sm:$0xf]
    %v2958 = vld [vmem:[#allocation10 + $0x19c] sm:$0xf]
    %v2959 = vld [vmem:[#allocation10 + $0x1a0] sm:$0xf]
    %v2960 = vld [vmem:[#allocation10 + $0x1a4] sm:$0xf]
    %v2961 = vld [vmem:[#allocation10 + $0x1a8] sm:$0xf]
    %v2962 = vld [vmem:[#allocation10 + $0x1ac] sm:$0xf]
    %v2963 = vld [vmem:[#allocation10 + $0x1b0] sm:$0xf]
    %v2964 = vld [vmem:[#allocation10 + $0x1b4] sm:$0xf]
    %v2965 = vld [vmem:[#allocation10 + $0x1b8] sm:$0xf]
    %v2966 = vld [vmem:[#allocation10 + $0x1bc] sm:$0xf]
    %v2967 = vld [vmem:[#allocation10 + $0x1c0] sm:$0xf]
    %v2968 = vld [vmem:[#allocation10 + $0x1c4] sm:$0xf]
    %v2969 = vld [vmem:[#allocation10 + $0x1c8] sm:$0xf]
    %v2970 = vld [vmem:[#allocation10 + $0x1cc] sm:$0xf]
    %v2971 = vld [vmem:[#allocation10 + $0x1d0] sm:$0xf]
    %v2972 = vld [vmem:[#allocation10 + $0x1d4] sm:$0xf]
    %v2973 = vld [vmem:[#allocation10 + $0x1d8] sm:$0xf]
    %v2974 = vld [vmem:[#allocation10 + $0x1dc] sm:$0xf]
    %v2975 = vld [vmem:[#allocation10 + $0x1e0] sm:$0xf]
    %v2976 = vld [vmem:[#allocation10 + $0x1e4] sm:$0xf]
    %v2977 = vld [vmem:[#allocation10 + $0x1e8] sm:$0xf]
    %v2978 = vld [vmem:[#allocation10 + $0x1ec] sm:$0xf]
    %v2979 = vld [vmem:[#allocation10 + $0x1f0] sm:$0xf]
    %v2980 = vld [vmem:[#allocation10 + $0x1f4] sm:$0xf]
    %v2981 = vld [vmem:[#allocation10 + $0x1f8] sm:$0xf]
    %v2982 = vld [vmem:[#allocation10 + $0x1fc] sm:$0xf]
    %v2983 = vld [vmem:[%s6] sm:$0x1]
    %v2985 = vlaneseq
    %v2986 = vshrl.u32 %v2985, 7
    %v2987 = vsub.s32 0, %v2986
    %v2988 = vrot.slane %v2983, %v2987
    %v3118 = vunpack.c.l.b16 %v2855
    %v3119 = vunpack.c.l.b16 %v2856
    %v3120 = vunpack.c.l.b16 %v2857
    %v3121 = vunpack.c.l.b16 %v2858
    %v3122 = vunpack.c.l.b16 %v2859
    %v3123 = vunpack.c.l.b16 %v2860
    %v3124 = vunpack.c.l.b16 %v2861
    %v3125 = vunpack.c.l.b16 %v2862
    %v3126 = vunpack.c.l.b16 %v2863
    %v3127 = vunpack.c.l.b16 %v2864
    %v3128 = vunpack.c.l.b16 %v2865
    %v3129 = vunpack.c.l.b16 %v2866
    %v3130 = vunpack.c.l.b16 %v2867
    %v3131 = vunpack.c.l.b16 %v2868
    %v3132 = vunpack.c.l.b16 %v2869
    %v3133 = vunpack.c.l.b16 %v2870
    %v3134 = vunpack.c.l.b16 %v2871
    %v3135 = vunpack.c.l.b16 %v2872
    %v3136 = vunpack.c.l.b16 %v2873
    %v3137 = vunpack.c.l.b16 %v2874
    %v3138 = vunpack.c.l.b16 %v2875
    %v3139 = vunpack.c.l.b16 %v2876
    %v3140 = vunpack.c.l.b16 %v2877
    %v3141 = vunpack.c.l.b16 %v2878
    %v3142 = vunpack.c.l.b16 %v2879
    %v3143 = vunpack.c.l.b16 %v2880
    %v3144 = vunpack.c.l.b16 %v2881
    %v3145 = vunpack.c.l.b16 %v2882
    %v3146 = vunpack.c.l.b16 %v2883
    %v3147 = vunpack.c.l.b16 %v2884
    %v3148 = vunpack.c.l.b16 %v2885
    %v3149 = vunpack.c.l.b16 %v2886
    %v3150 = vunpack.c.l.b16 %v2887
    %v3151 = vunpack.c.l.b16 %v2888
    %v3152 = vunpack.c.l.b16 %v2889
    %v3153 = vunpack.c.l.b16 %v2890
    %v3154 = vunpack.c.l.b16 %v2891
    %v3155 = vunpack.c.l.b16 %v2892
    %v3156 = vunpack.c.l.b16 %v2893
    %v3157 = vunpack.c.l.b16 %v2894
    %v3158 = vunpack.c.l.b16 %v2895
    %v3159 = vunpack.c.l.b16 %v2896
    %v3160 = vunpack.c.l.b16 %v2897
    %v3161 = vunpack.c.l.b16 %v2898
    %v3162 = vunpack.c.l.b16 %v2899
    %v3163 = vunpack.c.l.b16 %v2900
    %v3164 = vunpack.c.l.b16 %v2901
    %v3165 = vunpack.c.l.b16 %v2902
    %v3166 = vunpack.c.l.b16 %v2903
    %v3167 = vunpack.c.l.b16 %v2904
    %v3168 = vunpack.c.l.b16 %v2905
    %v3169 = vunpack.c.l.b16 %v2906
    %v3170 = vunpack.c.l.b16 %v2907
    %v3171 = vunpack.c.l.b16 %v2908
    %v3172 = vunpack.c.l.b16 %v2909
    %v3173 = vunpack.c.l.b16 %v2910
    %v3174 = vunpack.c.l.b16 %v2911
    %v3175 = vunpack.c.l.b16 %v2912
    %v3176 = vunpack.c.l.b16 %v2913
    %v3177 = vunpack.c.l.b16 %v2914
    %v3178 = vunpack.c.l.b16 %v2915
    %v3179 = vunpack.c.l.b16 %v2916
    %v3180 = vunpack.c.l.b16 %v2917
    %v3181 = vunpack.c.l.b16 %v2918
    %v3182 = vunpack.c.l.b16 %v2919
    %v3183 = vunpack.c.l.b16 %v2920
    %v3184 = vunpack.c.l.b16 %v2921
    %v3185 = vunpack.c.l.b16 %v2922
    %v3186 = vunpack.c.l.b16 %v2923
    %v3187 = vunpack.c.l.b16 %v2924
    %v3188 = vunpack.c.l.b16 %v2925
    %v3189 = vunpack.c.l.b16 %v2926
    %v3190 = vunpack.c.l.b16 %v2927
    %v3191 = vunpack.c.l.b16 %v2928
    %v3192 = vunpack.c.l.b16 %v2929
    %v3193 = vunpack.c.l.b16 %v2930
    %v3194 = vunpack.c.l.b16 %v2931
    %v3195 = vunpack.c.l.b16 %v2932
    %v3196 = vunpack.c.l.b16 %v2933
    %v3197 = vunpack.c.l.b16 %v2934
    %v3198 = vunpack.c.l.b16 %v2935
    %v3199 = vunpack.c.l.b16 %v2936
    %v3200 = vunpack.c.l.b16 %v2937
    %v3201 = vunpack.c.l.b16 %v2938
    %v3202 = vunpack.c.l.b16 %v2939
    %v3203 = vunpack.c.l.b16 %v2940
    %v3204 = vunpack.c.l.b16 %v2941
    %v3205 = vunpack.c.l.b16 %v2942
    %v3206 = vunpack.c.l.b16 %v2943
    %v3207 = vunpack.c.l.b16 %v2944
    %v3208 = vunpack.c.l.b16 %v2945
    %v3209 = vunpack.c.l.b16 %v2946
    %v3210 = vunpack.c.l.b16 %v2947
    %v3211 = vunpack.c.l.b16 %v2948
    %v3212 = vunpack.c.l.b16 %v2949
    %v3213 = vunpack.c.l.b16 %v2950
    %v3214 = vunpack.c.l.b16 %v2951
    %v3215 = vunpack.c.l.b16 %v2952
    %v3216 = vunpack.c.l.b16 %v2953
    %v3217 = vunpack.c.l.b16 %v2954
    %v3218 = vunpack.c.l.b16 %v2955
    %v3219 = vunpack.c.l.b16 %v2956
    %v3220 = vunpack.c.l.b16 %v2957
    %v3221 = vunpack.c.l.b16 %v2958
    %v3222 = vunpack.c.l.b16 %v2959
    %v3223 = vunpack.c.l.b16 %v2960
    %v3224 = vunpack.c.l.b16 %v2961
    %v3225 = vunpack.c.l.b16 %v2962
    %v3226 = vunpack.c.l.b16 %v2963
    %v3227 = vunpack.c.l.b16 %v2964
    %v3228 = vunpack.c.l.b16 %v2965
    %v3229 = vunpack.c.l.b16 %v2966
    %v3230 = vunpack.c.l.b16 %v2967
    %v3231 = vunpack.c.l.b16 %v2968
    %v3232 = vunpack.c.l.b16 %v2969
    %v3233 = vunpack.c.l.b16 %v2970
    %v3234 = vunpack.c.l.b16 %v2971
    %v3235 = vunpack.c.l.b16 %v2972
    %v3236 = vunpack.c.l.b16 %v2973
    %v3237 = vunpack.c.l.b16 %v2974
    %v3238 = vunpack.c.l.b16 %v2975
    %v3239 = vunpack.c.l.b16 %v2976
    %v3240 = vunpack.c.l.b16 %v2977
    %v3241 = vunpack.c.l.b16 %v2978
    %v3242 = vunpack.c.l.b16 %v2979
    %v3243 = vunpack.c.l.b16 %v2980
    %v3244 = vunpack.c.l.b16 %v2981
    %v3245 = vunpack.c.l.b16 %v2982
    %v3246 = vpack.c.b16 %v3119, %v3118
    %v3247 = vpack.c.b16 %v3121, %v3120
    %v3248 = vpack.c.b16 %v3123, %v3122
    %v3249 = vpack.c.b16 %v3125, %v3124
    %v3250 = vpack.c.b16 %v3127, %v3126
    %v3251 = vpack.c.b16 %v3129, %v3128
    %v3252 = vpack.c.b16 %v3131, %v3130
    %v3253 = vpack.c.b16 %v3133, %v3132
    %v3254 = vpack.c.b16 %v3135, %v3134
    %v3255 = vpack.c.b16 %v3137, %v3136
    %v3256 = vpack.c.b16 %v3139, %v3138
    %v3257 = vpack.c.b16 %v3141, %v3140
    %v3258 = vpack.c.b16 %v3143, %v3142
    %v3259 = vpack.c.b16 %v3145, %v3144
    %v3260 = vpack.c.b16 %v3147, %v3146
    %v3261 = vpack.c.b16 %v3149, %v3148
    %v3262 = vpack.c.b16 %v3151, %v3150
    %v3263 = vpack.c.b16 %v3153, %v3152
    %v3264 = vpack.c.b16 %v3155, %v3154
    %v3265 = vpack.c.b16 %v3157, %v3156
    %v3266 = vpack.c.b16 %v3159, %v3158
    %v3267 = vpack.c.b16 %v3161, %v3160
    %v3268 = vpack.c.b16 %v3163, %v3162
    %v3269 = vpack.c.b16 %v3165, %v3164
    %v3270 = vpack.c.b16 %v3167, %v3166
    %v3271 = vpack.c.b16 %v3169, %v3168
    %v3272 = vpack.c.b16 %v3171, %v3170
    %v3273 = vpack.c.b16 %v3173, %v3172
    %v3274 = vpack.c.b16 %v3175, %v3174
    %v3275 = vpack.c.b16 %v3177, %v3176
    %v3276 = vpack.c.b16 %v3179, %v3178
    %v3277 = vpack.c.b16 %v3181, %v3180
    %v3278 = vpack.c.b16 %v3183, %v3182
    %v3279 = vpack.c.b16 %v3185, %v3184
    %v3280 = vpack.c.b16 %v3187, %v3186
    %v3281 = vpack.c.b16 %v3189, %v3188
    %v3282 = vpack.c.b16 %v3191, %v3190
    %v3283 = vpack.c.b16 %v3193, %v3192
    %v3284 = vpack.c.b16 %v3195, %v3194
    %v3285 = vpack.c.b16 %v3197, %v3196
    %v3286 = vpack.c.b16 %v3199, %v3198
    %v3287 = vpack.c.b16 %v3201, %v3200
    %v3288 = vpack.c.b16 %v3203, %v3202
    %v3289 = vpack.c.b16 %v3205, %v3204
    %v3290 = vpack.c.b16 %v3207, %v3206
    %v3291 = vpack.c.b16 %v3209, %v3208
    %v3292 = vpack.c.b16 %v3211, %v3210
    %v3293 = vpack.c.b16 %v3213, %v3212
    %v3294 = vpack.c.b16 %v3215, %v3214
    %v3295 = vpack.c.b16 %v3217, %v3216
    %v3296 = vpack.c.b16 %v3219, %v3218
    %v3297 = vpack.c.b16 %v3221, %v3220
    %v3298 = vpack.c.b16 %v3223, %v3222
    %v3299 = vpack.c.b16 %v3225, %v3224
    %v3300 = vpack.c.b16 %v3227, %v3226
    %v3301 = vpack.c.b16 %v3229, %v3228
    %v3302 = vpack.c.b16 %v3231, %v3230
    %v3303 = vpack.c.b16 %v3233, %v3232
    %v3304 = vpack.c.b16 %v3235, %v3234
    %v3305 = vpack.c.b16 %v3237, %v3236
    %v3306 = vpack.c.b16 %v3239, %v3238
    %v3307 = vpack.c.b16 %v3241, %v3240
    %v3308 = vpack.c.b16 %v3243, %v3242
    %v3309 = vpack.c.b16 %v3245, %v3244
    %3374 = vmatprep.subr.bf16.mxu0 0
    %3375 = vmatpush1.bf16.msra.mxu0 %v3246
    %3376 = vmatprep.subr.bf16.mxu0 0
    %3377 = vmatpush1.bf16.msra.mxu0 %v3247
    %3378 = vmatprep.subr.bf16.mxu0 0
    %3379 = vmatpush1.bf16.msra.mxu0 %v3248
    %3380 = vmatprep.subr.bf16.mxu0 0
    %3381 = vmatpush1.bf16.msra.mxu0 %v3249
    %3382 = vmatprep.subr.bf16.mxu0 0
    %3383 = vmatpush1.bf16.msra.mxu0 %v3250
    %3384 = vmatprep.subr.bf16.mxu0 0
    %3385 = vmatpush1.bf16.msra.mxu0 %v3251
    %3386 = vmatprep.subr.bf16.mxu0 0
    %3387 = vmatpush1.bf16.msra.mxu0 %v3252
    %3388 = vmatprep.subr.bf16.mxu0 0
    %3389 = vmatpush1.bf16.msra.mxu0 %v3253
    %3390 = vmatprep.subr.bf16.mxu0 0
    %3391 = vmatpush1.bf16.msra.mxu0 %v3254
    %3392 = vmatprep.subr.bf16.mxu0 0
    %3393 = vmatpush1.bf16.msra.mxu0 %v3255
    %3394 = vmatprep.subr.bf16.mxu0 0
    %3395 = vmatpush1.bf16.msra.mxu0 %v3256
    %3396 = vmatprep.subr.bf16.mxu0 0
    %3397 = vmatpush1.bf16.msra.mxu0 %v3257
    %3398 = vmatprep.subr.bf16.mxu0 0
    %3399 = vmatpush1.bf16.msra.mxu0 %v3258
    %3400 = vmatprep.subr.bf16.mxu0 0
    %3401 = vmatpush1.bf16.msra.mxu0 %v3259
    %3402 = vmatprep.subr.bf16.mxu0 0
    %3403 = vmatpush1.bf16.msra.mxu0 %v3260
    %3404 = vmatprep.subr.bf16.mxu0 0
    %3405 = vmatpush1.bf16.msra.mxu0 %v3261
    %3406 = vmatprep.mubr.bf16.mxu0 %v2848
    %3407 = vmatmul.mubr.bf16.gmra.mrb[0].mxu0 %v2847
    %v3408 = vpop.f32.mrb[0].mxu0
    %v3409 = vadd.f32 %v2988, %v3408
    %v3410 = vpop.f32.mrb[0].mxu0
    %v3411 = vpop.f32.mrb[0].mxu0
    %v3412 = vadd.f32 %v2988, %v3411
    %v3413 = vpop.f32.mrb[0].mxu0
    %3414 = vdwg.mxu0
    %3415 = vmatprep.subr.bf16.mxu0 0
    %3416 = vmatpush1.bf16.msra.mxu0 %v3262
    %3417 = vmatprep.subr.bf16.mxu0 0
    %3418 = vmatpush1.bf16.msra.mxu0 %v3263
    %3419 = vmatprep.subr.bf16.mxu0 0
    %3420 = vmatpush1.bf16.msra.mxu0 %v3264
    %3421 = vmatprep.subr.bf16.mxu0 0
    %3422 = vmatpush1.bf16.msra.mxu0 %v3265
    %3423 = vmatprep.subr.bf16.mxu0 0
    %3424 = vmatpush1.bf16.msra.mxu0 %v3266
    %3425 = vmatprep.subr.bf16.mxu0 0
    %3426 = vmatpush1.bf16.msra.mxu0 %v3267
    %3427 = vmatprep.subr.bf16.mxu0 0
    %3428 = vmatpush1.bf16.msra.mxu0 %v3268
    %3429 = vmatprep.subr.bf16.mxu0 0
    %3430 = vmatpush1.bf16.msra.mxu0 %v3269
    %3431 = vmatprep.subr.bf16.mxu0 0
    %3432 = vmatpush1.bf16.msra.mxu0 %v3270
    %3433 = vmatprep.subr.bf16.mxu0 0
    %3434 = vmatpush1.bf16.msra.mxu0 %v3271
    %3435 = vmatprep.subr.bf16.mxu0 0
    %3436 = vmatpush1.bf16.msra.mxu0 %v3272
    %3437 = vmatprep.subr.bf16.mxu0 0
    %3438 = vmatpush1.bf16.msra.mxu0 %v3273
    %3439 = vmatprep.subr.bf16.mxu0 0
    %3440 = vmatpush1.bf16.msra.mxu0 %v3274
    %3441 = vmatprep.subr.bf16.mxu0 0
    %3442 = vmatpush1.bf16.msra.mxu0 %v3275
    %3443 = vmatprep.subr.bf16.mxu0 0
    %3444 = vmatpush1.bf16.msra.mxu0 %v3276
    %3445 = vmatprep.subr.bf16.mxu0 0
    %3446 = vmatpush1.bf16.msra.mxu0 %v3277
    %3447 = vmatprep.mubr.bf16.mxu0 %v2850
    %3448 = vmatmul.mubr.bf16.gmra.mrb[0].mxu0 %v2849
    %v3449 = vpop.f32.mrb[0].mxu0
    %v3450 = vadd.f32 %v3409, %v3449
    %v3451 = vpop.f32.mrb[0].mxu0
    %v3452 = vpop.f32.mrb[0].mxu0
    %v3453 = vadd.f32 %v3412, %v3452
    %v3454 = vpop.f32.mrb[0].mxu0
    %3455 = vdwg.mxu0
    %3456 = vmatprep.subr.bf16.mxu0 0
    %3457 = vmatpush1.bf16.msra.mxu0 %v3278
    %3458 = vmatprep.subr.bf16.mxu0 0
    %3459 = vmatpush1.bf16.msra.mxu0 %v3279
    %3460 = vmatprep.subr.bf16.mxu0 0
    %3461 = vmatpush1.bf16.msra.mxu0 %v3280
    %3462 = vmatprep.subr.bf16.mxu0 0
    %3463 = vmatpush1.bf16.msra.mxu0 %v3281
    %3464 = vmatprep.subr.bf16.mxu0 0
    %3465 = vmatpush1.bf16.msra.mxu0 %v3282
    %3466 = vmatprep.subr.bf16.mxu0 0
    %3467 = vmatpush1.bf16.msra.mxu0 %v3283
    %3468 = vmatprep.subr.bf16.mxu0 0
    %3469 = vmatpush1.bf16.msra.mxu0 %v3284
    %3470 = vmatprep.subr.bf16.mxu0 0
    %3471 = vmatpush1.bf16.msra.mxu0 %v3285
    %3472 = vmatprep.subr.bf16.mxu0 0
    %3473 = vmatpush1.bf16.msra.mxu0 %v3286
    %3474 = vmatprep.subr.bf16.mxu0 0
    %3475 = vmatpush1.bf16.msra.mxu0 %v3287
    %3476 = vmatprep.subr.bf16.mxu0 0
    %3477 = vmatpush1.bf16.msra.mxu0 %v3288
    %3478 = vmatprep.subr.bf16.mxu0 0
    %3479 = vmatpush1.bf16.msra.mxu0 %v3289
    %3480 = vmatprep.subr.bf16.mxu0 0
    %3481 = vmatpush1.bf16.msra.mxu0 %v3290
    %3482 = vmatprep.subr.bf16.mxu0 0
    %3483 = vmatpush1.bf16.msra.mxu0 %v3291
    %3484 = vmatprep.subr.bf16.mxu0 0
    %3485 = vmatpush1.bf16.msra.mxu0 %v3292
    %3486 = vmatprep.subr.bf16.mxu0 0
    %3487 = vmatpush1.bf16.msra.mxu0 %v3293
    %3488 = vmatprep.mubr.bf16.mxu0 %v2852
    %3489 = vmatmul.mubr.bf16.gmra.mrb[0].mxu0 %v2851
    %v3490 = vpop.f32.mrb[0].mxu0
    %v3491 = vadd.f32 %v3450, %v3490
    %v3492 = vpop.f32.mrb[0].mxu0
    %v3493 = vpop.f32.mrb[0].mxu0
    %v3494 = vadd.f32 %v3453, %v3493
    %v3495 = vpop.f32.mrb[0].mxu0
    %3496 = vdwg.mxu0
    %3497 = vmatprep.subr.bf16.mxu0 0
    %3498 = vmatpush1.bf16.msra.mxu0 %v3294
    %3499 = vmatprep.subr.bf16.mxu0 0
    %3500 = vmatpush1.bf16.msra.mxu0 %v3295
    %3501 = vmatprep.subr.bf16.mxu0 0
    %3502 = vmatpush1.bf16.msra.mxu0 %v3296
    %3503 = vmatprep.subr.bf16.mxu0 0
    %3504 = vmatpush1.bf16.msra.mxu0 %v3297
    %3505 = vmatprep.subr.bf16.mxu0 0
    %3506 = vmatpush1.bf16.msra.mxu0 %v3298
    %3507 = vmatprep.subr.bf16.mxu0 0
    %3508 = vmatpush1.bf16.msra.mxu0 %v3299
    %3509 = vmatprep.subr.bf16.mxu0 0
    %3510 = vmatpush1.bf16.msra.mxu0 %v3300
    %3511 = vmatprep.subr.bf16.mxu0 0
    %3512 = vmatpush1.bf16.msra.mxu0 %v3301
    %3513 = vmatprep.subr.bf16.mxu0 0
    %3514 = vmatpush1.bf16.msra.mxu0 %v3302
    %3515 = vmatprep.subr.bf16.mxu0 0
    %3516 = vmatpush1.bf16.msra.mxu0 %v3303
    %3517 = vmatprep.subr.bf16.mxu0 0
    %3518 = vmatpush1.bf16.msra.mxu0 %v3304
    %3519 = vmatprep.subr.bf16.mxu0 0
    %3520 = vmatpush1.bf16.msra.mxu0 %v3305
    %3521 = vmatprep.subr.bf16.mxu0 0
    %3522 = vmatpush1.bf16.msra.mxu0 %v3306
    %3523 = vmatprep.subr.bf16.mxu0 0
    %3524 = vmatpush1.bf16.msra.mxu0 %v3307
    %3525 = vmatprep.subr.bf16.mxu0 0
    %3526 = vmatpush1.bf16.msra.mxu0 %v3308
    %3527 = vmatprep.subr.bf16.mxu0 0
    %3528 = vmatpush1.bf16.msra.mxu0 %v3309
    %3529 = vmatprep.mubr.bf16.mxu0 %v2854
    %3530 = vmatmul.mubr.bf16.gmra.mrb[0].mxu0 %v2853
    %v3531 = vpop.f32.mrb[0].mxu0
    %v3532 = vadd.f32 %v3491, %v3531
    %v3533 = vpop.f32.mrb[0].mxu0
    %v3534 = vpop.f32.mrb[0].mxu0
    %v3535 = vadd.f32 %v3494, %v3534
    %v3536 = vpop.f32.mrb[0].mxu0
    %3537 = vdwg.mxu0
    %v3538 = vxor.u32 %v3532, 2147483648
    %v3539 = vxor.u32 %v3535, 2147483648
    %v3540 = vmul.f32 %v3538, 1.442695
    %v3541 = vpow.pop %v3540
    %v3542 = vmul.f32 %v3539, 1.442695
    %v3543 = vpow.pop %v3542
    %v3544 = vadd.f32 %v3541, 1.0
    %v3545 = vadd.f32 %v3543, 1.0
    %v3546 = vrcp.pop %v3544
    %v3547 = vmul.f32 1.0, %v3546
    %v3548 = vrcp.pop %v3545
    %v3549 = vmul.f32 1.0, %v3548
    %3550 = vst [vmem:[#allocation12] sm:$0xff] %v3547
    %3551 = vst [vmem:[#allocation12 + $0x8] sm:$0xff] %v3549
    // Predicated region
    $region46: #{tpu_custom_call.1} parent=1 // pred_check
      _
    $region47: #{tpu_custom_call.1} parent=1 // pred_check_branch
      %3553 = sbr.rel (0) target = $region49
    $region48: #{tpu_custom_call.1} parent=1 // pred_region
      %s3555 = ssub.s32 256, 256
      %3556 = vsyncadd [#allocation6], %s3555
      %s3557 = sshll.u32 [#allocation12], 4
      %s3558 = int_to_ptr.vmem [resolvable:$true] %s3557
      %3563 = dma.vmem_to_hbm [thread:$0]  %s3558, 256, %s7, [#allocation6], 128, 128, 8
    $region49: #{tpu_custom_call.1} parent=1 // pred_fallthru
      _
    // Predicated region
    $region50: #{tpu_custom_call.1} parent=1 // pred_check
      _
    $region51: #{tpu_custom_call.1} parent=1 // pred_check_branch
      %3565 = sbr.rel (0) target = $region53
    $region52: #{tpu_custom_call.1} parent=1 // pred_region
      %3566 = dma.done [#allocation6], 256
    $region53: #{tpu_custom_call.1} parent=1 // pred_fallthru
      _
    %3567 = vsyncpa [#allocation5], 1
    %3568 = vsyncpa [#allocation8], 1
    %3569 = vsyncpa [#allocation11], 1
    %3570 = vsyncpa [#allocation6], 1

</llo_original>
